<compile_context>
chip_gen: v7x
topology: tpu7x:2x2x1
jax: 0.10.0
libtpu: 0.0.40
codegen_flags: <defaults>
</compile_context>

<pallas_src>
import functools

import jax
import jax.numpy as jnp
from jax.experimental import pallas as pl
from jax.experimental.pallas import tpu as pltpu  # noqa: F401  (TPU backend assumed)


def block_kernel(x_ref,
                 ln1w_ref, ln1b_ref, ln2w_ref, ln2b_ref,
                 wqkv_ref, wo_ref, bo_ref,
                 w1_ref, b1_ref, w2_ref, b2_ref,
                 o_ref, *, batch, seq, n_heads, head_size):
    eps = 1e-5
    B, T, H, hs = batch, seq, n_heads, head_size
    x = x_ref[...].astype(jnp.float32)                       # (N, C), N = B*T
    N, C = x.shape

    def layer_norm(v, w_ref, b_ref):
        mu = jnp.mean(v, axis=-1, keepdims=True)
        var = jnp.mean((v - mu) ** 2, axis=-1, keepdims=True)
        return (v - mu) * jax.lax.rsqrt(var + eps) * w_ref[...] + b_ref[...]

    # ---------------- multi-head causal self-attention on LN1(x) -------------
    xn1 = layer_norm(x, ln1w_ref, ln1b_ref).astype(jnp.bfloat16)        # (N, C)

    # Single fused QKV matmul (scale already folded into the Q columns).
    qkv = jnp.dot(xn1, wqkv_ref[...],
                  preferred_element_type=jnp.float32)                    # (N, 3C)

    # Columns are head-interleaved [q_h | k_h | v_h] blocks of width 3*hs:
    # regroup (on f32, before the bf16 cast) into a head-batched layout.
    qkv_h = jnp.stack([qkv[:, h * 3 * hs:(h + 1) * 3 * hs]
                       for h in range(H)], axis=0)                       # (H, N, 3hs)
    # (H, B*T, hs) -> (H*B, T, hs) is a row-major-identity leading regroup.
    q = qkv_h[:, :, :hs].reshape(H * B, T, hs).astype(jnp.bfloat16)
    k = qkv_h[:, :, hs:2 * hs].reshape(H * B, T, hs).astype(jnp.bfloat16)
    v = qkv_h[:, :, 2 * hs:].reshape(H * B, T, hs).astype(jnp.bfloat16)

    att = jnp.einsum('nqd,nkd->nqk', q, k,
                     preferred_element_type=jnp.float32)                 # (HB, T, T)

    # Causal bias from a single (T,T) compare, broadcast over the HB dim.
    row = jax.lax.broadcasted_iota(jnp.int32, (T, T), 0)
    col = jax.lax.broadcasted_iota(jnp.int32, (T, T), 1)
    bias = jnp.where(row >= col, 0.0, -1e30)                             # (T, T) f32
    att = att + bias[None, :, :]

    att = att - jnp.max(att, axis=-1, keepdims=True)
    p = jnp.exp(att)
    p = p * pl.reciprocal(jnp.sum(p, axis=-1, keepdims=True), approx=True)

    sa_h = jnp.einsum('nqk,nkd->nqd', p.astype(jnp.bfloat16), v,
                      preferred_element_type=jnp.float32)                # (HB, T, hs)

    # Fuse the head reduction into the output projection: concat heads along
    # lanes -> (N, C), then one (N,C)@(C,C) MXU dot (contraction depth C).
    sa_h = sa_h.reshape(H, N, hs)
    sa_cat = jnp.concatenate([sa_h[h] for h in range(H)],
                             axis=-1).astype(jnp.bfloat16)               # (N, C)
    sa = jnp.dot(sa_cat, wo_ref[...],
                 preferred_element_type=jnp.float32) + bo_ref[...]       # (N, C)

    x = x + sa                                                           # residual 1

    # ---------------- feed-forward on LN2(x) ---------------------------------
    xn2 = layer_norm(x, ln2w_ref, ln2b_ref).astype(jnp.bfloat16)
    h1 = jnp.dot(xn2, w1_ref[...], preferred_element_type=jnp.float32) + b1_ref[...]
    h1 = jnp.maximum(h1, 0.0).astype(jnp.bfloat16)                       # ReLU
    ff = jnp.dot(h1, w2_ref[...], preferred_element_type=jnp.float32) + b2_ref[...]

    o_ref[...] = (x + ff).astype(o_ref.dtype)                            # residual 2


def transformer_block(x, params, *, n_heads):
    (ln1w, ln1b, ln2w, ln2b, wq, wk, wv, wo, bo, w1, b1, w2, b2) = params
    B, T, C = x.shape
    H = n_heads
    hs = C // n_heads
    scale = 1.0 / (hs ** 0.5)

    # One-time wrapper-side weight prep (would be pre-baked in real use):
    #   Wqkv columns: per-head-interleaved [ wq_h*scale | wk_h | wv_h ] blocks
    #   (softmax scale folded into the Q weights -> no in-kernel rescale).
    def split_head_cols(w):                      # (C, C) -> (H, C, hs)
        return w.reshape(C, H, hs).transpose(1, 0, 2)

    w_qkv_h = jnp.concatenate([split_head_cols(wq * scale),
                               split_head_cols(wk),
                               split_head_cols(wv)], axis=-1)            # (H, C, 3hs)
    w_qkv = w_qkv_h.transpose(1, 0, 2).reshape(C, 3 * C).astype(jnp.bfloat16)
    wo_b = wo.astype(jnp.bfloat16)
    w1_b = w1.astype(jnp.bfloat16)
    w2_b = w2.astype(jnp.bfloat16)

    x2d = x.reshape(B * T, C)                    # fold batch into rows

    kernel = functools.partial(block_kernel, batch=B, seq=T,
                               n_heads=H, head_size=hs)

    # Single invocation: no grid, every operand lives fully in VMEM.
    out = pl.pallas_call(
        kernel,
        out_shape=jax.ShapeDtypeStruct((B * T, C), x.dtype),
    )(x2d, ln1w, ln1b, ln2w, ln2b, w_qkv, wo_b, bo, w1_b, b1, w2_b, b2)
    return out.reshape(B, T, C)


def reference_block(x, params, *, n_heads):
    """Pure-JAX f32 reference mirroring the PyTorch Block forward."""
    (ln1w, ln1b, ln2w, ln2b, wq, wk, wv, wo, bo, w1, b1, w2, b2) = params
    B, T, C = x.shape
    hs = C // n_heads
    eps = 1e-5

    def ln(v, w, b):
        mu = jnp.mean(v, axis=-1, keepdims=True)
        var = jnp.mean((v - mu) ** 2, axis=-1, keepdims=True)
        return (v - mu) / jnp.sqrt(var + eps) * w + b

    xn1 = ln(x, ln1w, ln1b)
    q = xn1 @ wq
    k = xn1 @ wk
    v = xn1 @ wv
    q = q.reshape(B, T, n_heads, hs).transpose(0, 2, 1, 3)
    k = k.reshape(B, T, n_heads, hs).transpose(0, 2, 1, 3)
    v = v.reshape(B, T, n_heads, hs).transpose(0, 2, 1, 3)
    att = jnp.einsum("bhqd,bhkd->bhqk", q, k) / jnp.sqrt(hs)
    mask = jnp.tril(jnp.ones((T, T), bool))
    att = jnp.where(mask, att, -jnp.inf)
    att = jax.nn.softmax(att, axis=-1)
    sa = jnp.einsum("bhqk,bhkd->bhqd", att, v).transpose(0, 2, 1, 3).reshape(B, T, C)
    sa = sa @ wo + bo
    x = x + sa

    xn2 = ln(x, ln2w, ln2b)
    ff = jnp.maximum(xn2 @ w1 + b1, 0.0) @ w2 + b2
    return x + ff


def init_params(key, n_embeddings):
    C = n_embeddings
    Hid = 4 * C
    keys = jax.random.split(key, 13)
    s = 0.05
    ln1w = 1.0 + s * jax.random.normal(keys[0], (1, C), jnp.float32)
    ln1b = s * jax.random.normal(keys[1], (1, C), jnp.float32)
    ln2w = 1.0 + s * jax.random.normal(keys[2], (1, C), jnp.float32)
    ln2b = s * jax.random.normal(keys[3], (1, C), jnp.float32)
    wq = s * jax.random.normal(keys[4], (C, C), jnp.float32)   # heads concatenated
    wk = s * jax.random.normal(keys[5], (C, C), jnp.float32)
    wv = s * jax.random.normal(keys[6], (C, C), jnp.float32)
    wo = s * jax.random.normal(keys[7], (C, C), jnp.float32)
    bo = s * jax.random.normal(keys[8], (1, C), jnp.float32)
    w1 = s * jax.random.normal(keys[9], (C, Hid), jnp.float32)
    b1 = s * jax.random.normal(keys[10], (1, Hid), jnp.float32)
    w2 = s * jax.random.normal(keys[11], (Hid, C), jnp.float32)
    b2 = s * jax.random.normal(keys[12], (1, C), jnp.float32)
    return (ln1w, ln1b, ln2w, ln2b, wq, wk, wv, wo, bo, w1, b1, w2, b2)


if __name__ == "__main__":
    # Small shapes implied by the module: n_embeddings=32, block_size=8, n_heads=4.
    B, T, C, n_heads = 2, 8, 32, 4
    key = jax.random.PRNGKey(0)
    kx, kp = jax.random.split(key)
    x = jax.random.normal(kx, (B, T, C), jnp.float32)
    params = init_params(kp, C)

    out = transformer_block(x, params, n_heads=n_heads)
    out = jax.block_until_ready(out)

    ref = reference_block(x, params, n_heads=n_heads)
    assert out.shape == (B, T, C) and out.dtype == jnp.float32
    # bf16 matmuls + approx EUP reciprocal vs an all-f32 reference.
    assert jnp.allclose(out, ref, rtol=1e-2, atol=1e-2), "mismatch vs reference"

    print("KERNEL_OK")
</pallas_src>

<mosaic_0001>
module attributes {stable_mosaic.version = 11 : i64} {
  func.func @block_kernel(%arg0: memref<16x32xf32, #tpu.memory_space<vmem>>, %arg1: memref<1x32xf32, #tpu.memory_space<vmem>>, %arg2: memref<1x32xf32, #tpu.memory_space<vmem>>, %arg3: memref<1x32xf32, #tpu.memory_space<vmem>>, %arg4: memref<1x32xf32, #tpu.memory_space<vmem>>, %arg5: memref<32x96xbf16, #tpu.memory_space<vmem>>, %arg6: memref<32x32xbf16, #tpu.memory_space<vmem>>, %arg7: memref<1x32xf32, #tpu.memory_space<vmem>>, %arg8: memref<32x128xbf16, #tpu.memory_space<vmem>>, %arg9: memref<1x128xf32, #tpu.memory_space<vmem>>, %arg10: memref<128x32xbf16, #tpu.memory_space<vmem>>, %arg11: memref<1x32xf32, #tpu.memory_space<vmem>>, %arg12: memref<16x32xf32, #tpu.memory_space<vmem>>) attributes {dimension_semantics = [], scalar_prefetch = 0 : i64, scratch_operands = 0 : i64, tpu.core_type = #tpu.core_type<tc>} {
    %c0 = arith.constant 0 : index
    %c0_0 = arith.constant 0 : index
    %0 = vector.load %arg0[%c0, %c0_0] : memref<16x32xf32, #tpu.memory_space<vmem>>, vector<16x32xf32>
    %cst = arith.constant dense<0.000000e+00> : vector<16xf32>
    %1 = vector.multi_reduction <add>, %0, %cst [1] : vector<16x32xf32> to vector<16xf32>
    %2 = vector.shape_cast %1 : vector<16xf32> to vector<16x1xf32>
    %cst_1 = arith.constant 3.200000e+01 : f32
    %3 = vector.broadcast %cst_1 : f32 to vector<16x1xf32>
    %4 = arith.divf %2, %3 : vector<16x1xf32>
    %5 = vector.broadcast %4 : vector<16x1xf32> to vector<16x32xf32>
    %6 = arith.subf %0, %5 : vector<16x32xf32>
    %7 = arith.mulf %6, %6 : vector<16x32xf32>
    %cst_2 = arith.constant dense<0.000000e+00> : vector<16xf32>
    %8 = vector.multi_reduction <add>, %7, %cst_2 [1] : vector<16x32xf32> to vector<16xf32>
    %9 = vector.shape_cast %8 : vector<16xf32> to vector<16x1xf32>
    %cst_3 = arith.constant 3.200000e+01 : f32
    %10 = vector.broadcast %cst_3 : f32 to vector<16x1xf32>
    %11 = arith.divf %9, %10 : vector<16x1xf32>
    %12 = vector.broadcast %4 : vector<16x1xf32> to vector<16x32xf32>
    %13 = arith.subf %0, %12 : vector<16x32xf32>
    %cst_4 = arith.constant 9.99999974E-6 : f32
    %14 = vector.broadcast %cst_4 : f32 to vector<16x1xf32>
    %15 = arith.addf %11, %14 : vector<16x1xf32>
    %16 = math.rsqrt %15 : vector<16x1xf32>
    %17 = vector.broadcast %16 : vector<16x1xf32> to vector<16x32xf32>
    %18 = arith.mulf %13, %17 : vector<16x32xf32>
    %c0_5 = arith.constant 0 : index
    %c0_6 = arith.constant 0 : index
    %19 = vector.load %arg1[%c0_5, %c0_6] : memref<1x32xf32, #tpu.memory_space<vmem>>, vector<1x32xf32>
    %20 = vector.broadcast %19 : vector<1x32xf32> to vector<16x32xf32>
    %21 = arith.mulf %18, %20 : vector<16x32xf32>
    %c0_7 = arith.constant 0 : index
    %c0_8 = arith.constant 0 : index
    %22 = vector.load %arg2[%c0_7, %c0_8] : memref<1x32xf32, #tpu.memory_space<vmem>>, vector<1x32xf32>
    %23 = vector.broadcast %22 : vector<1x32xf32> to vector<16x32xf32>
    %24 = arith.addf %21, %23 : vector<16x32xf32>
    %25 = arith.truncf %24 : vector<16x32xf32> to vector<16x32xbf16>
    %c0_9 = arith.constant 0 : index
    %c0_10 = arith.constant 0 : index
    %26 = vector.load %arg5[%c0_9, %c0_10] : memref<32x96xbf16, #tpu.memory_space<vmem>>, vector<32x96xbf16>
    %cst_11 = arith.constant dense<0.000000e+00> : vector<16x96xf32>
    %27 = tpu.matmul %25, %26, %cst_11 {dimension_numbers = #tpu.dot_dimension_numbers<[1], [0], [0], [1], [0, 0, 1, 1], [], []>} : vector<16x32xbf16>, vector<32x96xbf16>, vector<16x96xf32> -> vector<16x96xf32>
    %28 = vector.extract_strided_slice %27 {offsets = [0, 0], sizes = [16, 24], strides = [1, 1]} : vector<16x96xf32> to vector<16x24xf32>
    %29 = vector.extract_strided_slice %27 {offsets = [0, 24], sizes = [16, 24], strides = [1, 1]} : vector<16x96xf32> to vector<16x24xf32>
    %30 = vector.extract_strided_slice %27 {offsets = [0, 48], sizes = [16, 24], strides = [1, 1]} : vector<16x96xf32> to vector<16x24xf32>
    %31 = vector.extract_strided_slice %27 {offsets = [0, 72], sizes = [16, 24], strides = [1, 1]} : vector<16x96xf32> to vector<16x24xf32>
    %32 = vector.shape_cast %28 : vector<16x24xf32> to vector<1x16x24xf32>
    %33 = vector.shape_cast %29 : vector<16x24xf32> to vector<1x16x24xf32>
    %34 = vector.shape_cast %30 : vector<16x24xf32> to vector<1x16x24xf32>
    %35 = vector.shape_cast %31 : vector<16x24xf32> to vector<1x16x24xf32>
    %36 = tpu.concatenate %32, %33, %34, %35 in 0 : vector<1x16x24xf32>, vector<1x16x24xf32>, vector<1x16x24xf32>, vector<1x16x24xf32> -> vector<4x16x24xf32>
    %37 = vector.extract_strided_slice %36 {offsets = [0, 0, 0], sizes = [4, 16, 8], strides = [1, 1, 1]} : vector<4x16x24xf32> to vector<4x16x8xf32>
    %38 = vector.shape_cast %37 : vector<4x16x8xf32> to vector<8x8x8xf32>
    %39 = arith.truncf %38 : vector<8x8x8xf32> to vector<8x8x8xbf16>
    %40 = vector.extract_strided_slice %36 {offsets = [0, 0, 8], sizes = [4, 16, 8], strides = [1, 1, 1]} : vector<4x16x24xf32> to vector<4x16x8xf32>
    %41 = vector.shape_cast %40 : vector<4x16x8xf32> to vector<8x8x8xf32>
    %42 = arith.truncf %41 : vector<8x8x8xf32> to vector<8x8x8xbf16>
    %43 = vector.extract_strided_slice %36 {offsets = [0, 0, 16], sizes = [4, 16, 8], strides = [1, 1, 1]} : vector<4x16x24xf32> to vector<4x16x8xf32>
    %44 = vector.shape_cast %43 : vector<4x16x8xf32> to vector<8x8x8xf32>
    %45 = arith.truncf %44 : vector<8x8x8xf32> to vector<8x8x8xbf16>
    "tpu.trace_start"() <{level = 10 : i32, message = "nqd,nkd->nqk"}> : () -> ()
    %cst_12 = arith.constant dense<0.000000e+00> : vector<8x8x8xf32>
    %46 = tpu.matmul %39, %42, %cst_12 {dimension_numbers = #tpu.dot_dimension_numbers<[2], [2], [1], [1], [0, 0, 0, 1, 1, 1], [0], [0]>} : vector<8x8x8xbf16>, vector<8x8x8xbf16>, vector<8x8x8xf32> -> vector<8x8x8xf32>
    "tpu.trace_stop"() : () -> ()
    %47 = tpu.iota {dimensions = array<i32: 0>} : vector<8x8xi32>
    %48 = tpu.iota {dimensions = array<i32: 1>} : vector<8x8xi32>
    %49 = arith.cmpi sge, %47, %48 : vector<8x8xi32>
    %cst_13 = arith.constant 0.000000e+00 : f32
    %cst_14 = arith.constant -1.000000e+30 : f32
    %50 = vector.broadcast %cst_13 : f32 to vector<8x8xf32>
    %51 = vector.broadcast %cst_14 : f32 to vector<8x8xf32>
    %52 = arith.select %49, %50, %51 : vector<8x8xi1>, vector<8x8xf32>
    %53 = vector.shape_cast %52 : vector<8x8xf32> to vector<1x8x8xf32>
    %54 = vector.broadcast %53 : vector<1x8x8xf32> to vector<8x8x8xf32>
    %55 = arith.addf %46, %54 : vector<8x8x8xf32>
    %cst_15 = arith.constant dense<0xFF800000> : vector<8x8xf32>
    %56 = vector.multi_reduction <maximumf>, %55, %cst_15 [2] : vector<8x8x8xf32> to vector<8x8xf32>
    %57 = vector.shape_cast %56 : vector<8x8xf32> to vector<8x8x1xf32>
    %58 = vector.broadcast %57 : vector<8x8x1xf32> to vector<8x8x8xf32>
    %59 = arith.subf %55, %58 : vector<8x8x8xf32>
    %60 = math.exp %59 : vector<8x8x8xf32>
    %cst_16 = arith.constant dense<0.000000e+00> : vector<8x8xf32>
    %61 = vector.multi_reduction <add>, %60, %cst_16 [2] : vector<8x8x8xf32> to vector<8x8xf32>
    %62 = vector.shape_cast %61 : vector<8x8xf32> to vector<8x8x1xf32>
    %63 = tpu.reciprocal %62 {approx = true} : vector<8x8x1xf32> -> vector<8x8x1xf32>
    %64 = vector.broadcast %63 : vector<8x8x1xf32> to vector<8x8x8xf32>
    %65 = arith.mulf %60, %64 : vector<8x8x8xf32>
    %66 = arith.truncf %65 : vector<8x8x8xf32> to vector<8x8x8xbf16>
    "tpu.trace_start"() <{level = 10 : i32, message = "nqk,nkd->nqd"}> : () -> ()
    %cst_17 = arith.constant dense<0.000000e+00> : vector<8x8x8xf32>
    %67 = tpu.matmul %66, %45, %cst_17 {dimension_numbers = #tpu.dot_dimension_numbers<[2], [1], [1], [2], [0, 0, 0, 1, 1, 2], [0], [0]>} : vector<8x8x8xbf16>, vector<8x8x8xbf16>, vector<8x8x8xf32> -> vector<8x8x8xf32>
    "tpu.trace_stop"() : () -> ()
    %68 = vector.shape_cast %67 : vector<8x8x8xf32> to vector<4x16x8xf32>
    %69 = vector.extract_strided_slice %68 {offsets = [0, 0, 0], sizes = [1, 16, 8], strides = [1, 1, 1]} : vector<4x16x8xf32> to vector<1x16x8xf32>
    %70 = vector.shape_cast %69 : vector<1x16x8xf32> to vector<16x8xf32>
    %71 = vector.extract_strided_slice %68 {offsets = [1, 0, 0], sizes = [1, 16, 8], strides = [1, 1, 1]} : vector<4x16x8xf32> to vector<1x16x8xf32>
    %72 = vector.shape_cast %71 : vector<1x16x8xf32> to vector<16x8xf32>
    %73 = vector.extract_strided_slice %68 {offsets = [2, 0, 0], sizes = [1, 16, 8], strides = [1, 1, 1]} : vector<4x16x8xf32> to vector<1x16x8xf32>
    %74 = vector.shape_cast %73 : vector<1x16x8xf32> to vector<16x8xf32>
    %75 = vector.extract_strided_slice %68 {offsets = [3, 0, 0], sizes = [1, 16, 8], strides = [1, 1, 1]} : vector<4x16x8xf32> to vector<1x16x8xf32>
    %76 = vector.shape_cast %75 : vector<1x16x8xf32> to vector<16x8xf32>
    %77 = tpu.concatenate %70, %72, %74, %76 in 1 : vector<16x8xf32>, vector<16x8xf32>, vector<16x8xf32>, vector<16x8xf32> -> vector<16x32xf32>
    %78 = arith.truncf %77 : vector<16x32xf32> to vector<16x32xbf16>
    %c0_18 = arith.constant 0 : index
    %c0_19 = arith.constant 0 : index
    %79 = vector.load %arg6[%c0_18, %c0_19] : memref<32x32xbf16, #tpu.memory_space<vmem>>, vector<32x32xbf16>
    %cst_20 = arith.constant dense<0.000000e+00> : vector<16x32xf32>
    %80 = tpu.matmul %78, %79, %cst_20 {dimension_numbers = #tpu.dot_dimension_numbers<[1], [0], [0], [1], [0, 0, 1, 1], [], []>} : vector<16x32xbf16>, vector<32x32xbf16>, vector<16x32xf32> -> vector<16x32xf32>
    %c0_21 = arith.constant 0 : index
    %c0_22 = arith.constant 0 : index
    %81 = vector.load %arg7[%c0_21, %c0_22] : memref<1x32xf32, #tpu.memory_space<vmem>>, vector<1x32xf32>
    %82 = vector.broadcast %81 : vector<1x32xf32> to vector<16x32xf32>
    %83 = arith.addf %80, %82 : vector<16x32xf32>
    %84 = arith.addf %0, %83 : vector<16x32xf32>
    %cst_23 = arith.constant dense<0.000000e+00> : vector<16xf32>
    %85 = vector.multi_reduction <add>, %84, %cst_23 [1] : vector<16x32xf32> to vector<16xf32>
    %86 = vector.shape_cast %85 : vector<16xf32> to vector<16x1xf32>
    %cst_24 = arith.constant 3.200000e+01 : f32
    %87 = vector.broadcast %cst_24 : f32 to vector<16x1xf32>
    %88 = arith.divf %86, %87 : vector<16x1xf32>
    %89 = vector.broadcast %88 : vector<16x1xf32> to vector<16x32xf32>
    %90 = arith.subf %84, %89 : vector<16x32xf32>
    %91 = arith.mulf %90, %90 : vector<16x32xf32>
    %cst_25 = arith.constant dense<0.000000e+00> : vector<16xf32>
    %92 = vector.multi_reduction <add>, %91, %cst_25 [1] : vector<16x32xf32> to vector<16xf32>
    %93 = vector.shape_cast %92 : vector<16xf32> to vector<16x1xf32>
    %cst_26 = arith.constant 3.200000e+01 : f32
    %94 = vector.broadcast %cst_26 : f32 to vector<16x1xf32>
    %95 = arith.divf %93, %94 : vector<16x1xf32>
    %96 = vector.broadcast %88 : vector<16x1xf32> to vector<16x32xf32>
    %97 = arith.subf %84, %96 : vector<16x32xf32>
    %cst_27 = arith.constant 9.99999974E-6 : f32
    %98 = vector.broadcast %cst_27 : f32 to vector<16x1xf32>
    %99 = arith.addf %95, %98 : vector<16x1xf32>
    %100 = math.rsqrt %99 : vector<16x1xf32>
    %101 = vector.broadcast %100 : vector<16x1xf32> to vector<16x32xf32>
    %102 = arith.mulf %97, %101 : vector<16x32xf32>
    %c0_28 = arith.constant 0 : index
    %c0_29 = arith.constant 0 : index
    %103 = vector.load %arg3[%c0_28, %c0_29] : memref<1x32xf32, #tpu.memory_space<vmem>>, vector<1x32xf32>
    %104 = vector.broadcast %103 : vector<1x32xf32> to vector<16x32xf32>
    %105 = arith.mulf %102, %104 : vector<16x32xf32>
    %c0_30 = arith.constant 0 : index
    %c0_31 = arith.constant 0 : index
    %106 = vector.load %arg4[%c0_30, %c0_31] : memref<1x32xf32, #tpu.memory_space<vmem>>, vector<1x32xf32>
    %107 = vector.broadcast %106 : vector<1x32xf32> to vector<16x32xf32>
    %108 = arith.addf %105, %107 : vector<16x32xf32>
    %109 = arith.truncf %108 : vector<16x32xf32> to vector<16x32xbf16>
    %c0_32 = arith.constant 0 : index
    %c0_33 = arith.constant 0 : index
    %110 = vector.load %arg8[%c0_32, %c0_33] : memref<32x128xbf16, #tpu.memory_space<vmem>>, vector<32x128xbf16>
    %cst_34 = arith.constant dense<0.000000e+00> : vector<16x128xf32>
    %111 = tpu.matmul %109, %110, %cst_34 {dimension_numbers = #tpu.dot_dimension_numbers<[1], [0], [0], [1], [0, 0, 1, 1], [], []>} : vector<16x32xbf16>, vector<32x128xbf16>, vector<16x128xf32> -> vector<16x128xf32>
    %c0_35 = arith.constant 0 : index
    %c0_36 = arith.constant 0 : index
    %112 = vector.load %arg9[%c0_35, %c0_36] : memref<1x128xf32, #tpu.memory_space<vmem>>, vector<1x128xf32>
    %113 = vector.broadcast %112 : vector<1x128xf32> to vector<16x128xf32>
    %114 = arith.addf %111, %113 : vector<16x128xf32>
    %cst_37 = arith.constant 0.000000e+00 : f32
    %115 = vector.broadcast %cst_37 : f32 to vector<16x128xf32>
    %116 = arith.maximumf %114, %115 : vector<16x128xf32>
    %117 = arith.truncf %116 : vector<16x128xf32> to vector<16x128xbf16>
    %c0_38 = arith.constant 0 : index
    %c0_39 = arith.constant 0 : index
    %118 = vector.load %arg10[%c0_38, %c0_39] : memref<128x32xbf16, #tpu.memory_space<vmem>>, vector<128x32xbf16>
    %cst_40 = arith.constant dense<0.000000e+00> : vector<16x32xf32>
    %119 = tpu.matmul %117, %118, %cst_40 {dimension_numbers = #tpu.dot_dimension_numbers<[1], [0], [0], [1], [0, 0, 1, 1], [], []>} : vector<16x128xbf16>, vector<128x32xbf16>, vector<16x32xf32> -> vector<16x32xf32>
    %c0_41 = arith.constant 0 : index
    %c0_42 = arith.constant 0 : index
    %120 = vector.load %arg11[%c0_41, %c0_42] : memref<1x32xf32, #tpu.memory_space<vmem>>, vector<1x32xf32>
    %121 = vector.broadcast %120 : vector<1x32xf32> to vector<16x32xf32>
    %122 = arith.addf %119, %121 : vector<16x32xf32>
    %123 = arith.addf %84, %122 : vector<16x32xf32>
    %c0_43 = arith.constant 0 : index
    %c0_44 = arith.constant 0 : index
    %124 = vector.load %arg12[%c0_43, %c0_44] : memref<16x32xf32, #tpu.memory_space<vmem>>, vector<16x32xf32>
    tpu.vector_store %arg12[%c0_43, %c0_44], %123 {strides = array<i32>} : memref<16x32xf32, #tpu.memory_space<vmem>>, vector<16x32xf32>,
    return
  }
}

</mosaic_0001>

<llo_original>
// kernel: tpu_custom_call.1
$region0: #{tpu_custom_call.1}
  #allocation0 [shape = 'u32[]', space=smem, size = 0x4, offset = 0x4, fixed_abs, tag = 'smem constant byte address 0x4 - core index']
  #allocation1 [shape = 'u32[144,128]{1,0:T(1,128)}', space=vmem, size = 0x12000, scoped, tag = 'internal scratch']
  %s0 = inlined_call_operand.vmem [shape: f32[16,32], index: 0, kind: input, shape index: {}]
  %s1 = inlined_call_operand.vmem [shape: f32[1,32], index: 1, kind: input, shape index: {}]
  %s2 = inlined_call_operand.vmem [shape: f32[1,32], index: 2, kind: input, shape index: {}]
  %s3 = inlined_call_operand.vmem [shape: f32[1,32], index: 3, kind: input, shape index: {}]
  %s4 = inlined_call_operand.vmem [shape: f32[1,32], index: 4, kind: input, shape index: {}]
  %s5 = inlined_call_operand.vmem [shape: bf16[32,96], index: 5, kind: input, shape index: {}]
  %s6 = inlined_call_operand.vmem [shape: bf16[32,32], index: 6, kind: input, shape index: {}]
  %s7 = inlined_call_operand.vmem [shape: f32[1,32], index: 7, kind: input, shape index: {}]
  %s8 = inlined_call_operand.vmem [shape: bf16[32,128], index: 8, kind: input, shape index: {}]
  %s9 = inlined_call_operand.vmem [shape: f32[1,128], index: 9, kind: input, shape index: {}]
  %s10 = inlined_call_operand.vmem [shape: bf16[128,32], index: 10, kind: input, shape index: {}]
  %s11 = inlined_call_operand.vmem [shape: f32[1,32], index: 11, kind: input, shape index: {}]
  %s12 = inlined_call_operand.hbm [shape: f32[16,32], index: 12, kind: output, shape index: {}]
  %s13 = sld [smem:[#allocation0]]
  $region58: #{tpu_custom_call.1} parent=0
    _
  %s15 = ssub.s32 1, %s13
  %s16 = scalar_select 0, %s15, %s13
  $region1: #{tpu_custom_call.1} parent=0
    #allocation2 [shape = 'u8[8192]{0}', space=vmem, size = 0x2000, scoped, tag = 'output window, operand 0, single buffered']
    #allocation3 [shape = 's32[1]{0}', space=sflag, size = 0x4, scoped, tag = 'scoped memory for tpu_custom_call.1']
    %17 = vsyncpa [#allocation3], 0
    // Predicated region
    $region2: #{tpu_custom_call.1} parent=1 // pred_check
      _
    $region3: #{tpu_custom_call.1} parent=1 // pred_check_branch
      %19 = sbr.rel (0) target = $region5
    $region4: #{tpu_custom_call.1} parent=1 // pred_region
      _
    $region5: #{tpu_custom_call.1} parent=1 // pred_fallthru
      _
    // Predicated region
    $region6: #{tpu_custom_call.1} parent=1 // pred_check
      _
    $region7: #{tpu_custom_call.1} parent=1 // pred_check_branch
      %21 = sbr.rel (0) target = $region9
    $region8: #{tpu_custom_call.1} parent=1 // pred_region
      _
    $region9: #{tpu_custom_call.1} parent=1 // pred_fallthru
      _
    // Predicated region
    $region10: #{tpu_custom_call.1} parent=1 // pred_check
      _
    $region11: #{tpu_custom_call.1} parent=1 // pred_check_branch
      %23 = sbr.rel (0) target = $region13
    $region12: #{tpu_custom_call.1} parent=1 // pred_region
      _
    $region13: #{tpu_custom_call.1} parent=1 // pred_fallthru
      _
    // Predicated region
    $region14: #{tpu_custom_call.1} parent=1 // pred_check
      _
    $region15: #{tpu_custom_call.1} parent=1 // pred_check_branch
      %25 = sbr.rel (0) target = $region17
    $region16: #{tpu_custom_call.1} parent=1 // pred_region
      _
    $region17: #{tpu_custom_call.1} parent=1 // pred_fallthru
      _
    // Predicated region
    $region18: #{tpu_custom_call.1} parent=1 // pred_check
      _
    $region19: #{tpu_custom_call.1} parent=1 // pred_check_branch
      %27 = sbr.rel (0) target = $region21
    $region20: #{tpu_custom_call.1} parent=1 // pred_region
      _
    $region21: #{tpu_custom_call.1} parent=1 // pred_fallthru
      _
    // Predicated region
    $region22: #{tpu_custom_call.1} parent=1 // pred_check
      _
    $region23: #{tpu_custom_call.1} parent=1 // pred_check_branch
      %29 = sbr.rel (0) target = $region25
    $region24: #{tpu_custom_call.1} parent=1 // pred_region
      _
    $region25: #{tpu_custom_call.1} parent=1 // pred_fallthru
      _
    // Predicated region
    $region26: #{tpu_custom_call.1} parent=1 // pred_check
      _
    $region27: #{tpu_custom_call.1} parent=1 // pred_check_branch
      %31 = sbr.rel (0) target = $region29
    $region28: #{tpu_custom_call.1} parent=1 // pred_region
      _
    $region29: #{tpu_custom_call.1} parent=1 // pred_fallthru
      _
    // Predicated region
    $region30: #{tpu_custom_call.1} parent=1 // pred_check
      _
    $region31: #{tpu_custom_call.1} parent=1 // pred_check_branch
      %33 = sbr.rel (0) target = $region33
    $region32: #{tpu_custom_call.1} parent=1 // pred_region
      _
    $region33: #{tpu_custom_call.1} parent=1 // pred_fallthru
      _
    // Predicated region
    $region34: #{tpu_custom_call.1} parent=1 // pred_check
      _
    $region35: #{tpu_custom_call.1} parent=1 // pred_check_branch
      %35 = sbr.rel (0) target = $region37
    $region36: #{tpu_custom_call.1} parent=1 // pred_region
      _
    $region37: #{tpu_custom_call.1} parent=1 // pred_fallthru
      _
    // Predicated region
    $region38: #{tpu_custom_call.1} parent=1 // pred_check
      _
    $region39: #{tpu_custom_call.1} parent=1 // pred_check_branch
      %37 = sbr.rel (0) target = $region41
    $region40: #{tpu_custom_call.1} parent=1 // pred_region
      _
    $region41: #{tpu_custom_call.1} parent=1 // pred_fallthru
      _
    // Predicated region
    $region42: #{tpu_custom_call.1} parent=1 // pred_check
      _
    $region43: #{tpu_custom_call.1} parent=1 // pred_check_branch
      %39 = sbr.rel (0) target = $region45
    $region44: #{tpu_custom_call.1} parent=1 // pred_region
      _
    $region45: #{tpu_custom_call.1} parent=1 // pred_fallthru
      _
    // Predicated region
    $region46: #{tpu_custom_call.1} parent=1 // pred_check
      _
    $region47: #{tpu_custom_call.1} parent=1 // pred_check_branch
      %41 = sbr.rel (0) target = $region49
    $region48: #{tpu_custom_call.1} parent=1 // pred_region
      _
    $region49: #{tpu_custom_call.1} parent=1 // pred_fallthru
      _
    %v43 = vld [vmem:[%s0] sm:$0xff]
    %v44 = vld [vmem:[%s0 + $0x8] sm:$0xff]
    %vm45 = vcmask 261120
    %v46 = vsel %vm45, %v43, 0.0
    %47 = vadd.xlane.f32.xlu0 %v46
    %v48 = vpop.xlane.xlu0 %47
    %v49 = vsel %vm45, %v44, 0.0
    %50 = vadd.xlane.f32.xlu0 %v49
    %v51 = vpop.xlane.xlu0 %50
    %v52 = vrcp.pop 32.0
    %v53 = vmul.f32 %v48, %v52
    %v54 = vmul.f32 %v51, %v52
    %v55 = vsub.f32 %v43, %v53
    %v56 = vsub.f32 %v44, %v54
    %v57 = vmul.f32 %v55, %v55
    %v58 = vmul.f32 %v56, %v56
    %v59 = vsel %vm45, %v57, 0.0
    %60 = vadd.xlane.f32.xlu0 %v59
    %v61 = vpop.xlane.xlu0 %60
    %v62 = vsel %vm45, %v58, 0.0
    %63 = vadd.xlane.f32.xlu0 %v62
    %v64 = vpop.xlane.xlu0 %63
    %v65 = vmul.f32 %v61, %v52
    %v66 = vmul.f32 %v64, %v52
    %v67 = vadd.f32 %v65, 1e-05
    %v68 = vadd.f32 %v66, 1e-05
    %v69 = vrsqrt.pop %v67
    %v70 = vrsqrt.pop %v68
    %v71 = vmul.f32 %v55, %v69
    %v72 = vmul.f32 %v56, %v70
    %v73 = vld [vmem:[%s1] sm:$0x1]
    %v75 = vlaneseq
    %v76 = vshrl.u32 %v75, 7
    %v77 = vsub.s32 0, %v76
    %v78 = vrot.slane %v73, %v77
    %v80 = vmul.f32 %v71, %v78
    %v81 = vmul.f32 %v72, %v78
    %v82 = vld [vmem:[%s2] sm:$0x1]
    %v84 = vlaneseq
    %v85 = vshrl.u32 %v84, 7
    %v86 = vsub.s32 0, %v85
    %v87 = vrot.slane %v82, %v86
    %v89 = vadd.f32 %v80, %v87
    %v90 = vadd.f32 %v81, %v87
    %v91 = vpack.c.bf16 %v90, %v89
    %v92 = vld [vmem:[%s5] sm:$0xf]
    %v93 = vld [vmem:[%s5 + $0x4] sm:$0xf]
    %v94 = vld [vmem:[%s5 + $0x8] sm:$0xf]
    %v95 = vld [vmem:[%s5 + $0xc] sm:$0xf]
    %v100 = vunpack.c.l.b16 %v92
    %v101 = vunpack.c.l.b16 %v93
    %v102 = vunpack.c.l.b16 %v94
    %v103 = vunpack.c.l.b16 %v95
    %v104 = vpack.c.b16 %v101, %v100
    %v105 = vpack.c.b16 %v103, %v102
    %v109 = vsel %vm45, %v91, 0
    %111 = vmatprep.subr.bf16.mxu0 0
    %112 = vmatpush1.bf16.msra.mxu0 %v104
    %113 = vmatprep.subr.bf16.mxu0 0
    %114 = vmatpush1.bf16.msra.mxu0 %v105
    %115 = vmatprep.subr.bf16.mxu0 0
    %116 = vmatpush1.bf16.msra.mxu0 0
    %117 = vmatprep.subr.bf16.mxu0 0
    %118 = vmatpush1.bf16.msra.mxu0 0
    %119 = vmatprep.subr.bf16.mxu0 0
    %120 = vmatpush1.bf16.msra.mxu0 0
    %121 = vmatprep.subr.bf16.mxu0 0
    %122 = vmatpush1.bf16.msra.mxu0 0
    %123 = vmatprep.subr.bf16.mxu0 0
    %124 = vmatpush1.bf16.msra.mxu0 0
    %125 = vmatprep.subr.bf16.mxu0 0
    %126 = vmatpush1.bf16.msra.mxu0 0
    %127 = vmatprep.subr.bf16.mxu0 0
    %128 = vmatpush1.bf16.msra.mxu0 0
    %129 = vmatprep.subr.bf16.mxu0 0
    %130 = vmatpush1.bf16.msra.mxu0 0
    %131 = vmatprep.subr.bf16.mxu0 0
    %132 = vmatpush1.bf16.msra.mxu0 0
    %133 = vmatprep.subr.bf16.mxu0 0
    %134 = vmatpush1.bf16.msra.mxu0 0
    %135 = vmatprep.subr.bf16.mxu0 0
    %136 = vmatpush1.bf16.msra.mxu0 0
    %137 = vmatprep.subr.bf16.mxu0 0
    %138 = vmatpush1.bf16.msra.mxu0 0
    %139 = vmatprep.subr.bf16.mxu0 0
    %140 = vmatpush1.bf16.msra.mxu0 0
    %141 = vmatprep.subr.bf16.mxu0 0
    %142 = vmatpush1.bf16.msra.mxu0 0
    %143 = vmatprep.mubr.bf16.mxu0 0
    %144 = vmatmul.mubr.bf16.gmra.mrb[0].mxu0 %v109
    %v145 = vpop.f32.mrb[0].mxu0
    %v146 = vadd.f32 0.0, %v145
    %v147 = vpop.f32.mrb[0].mxu0
    %v148 = vpop.f32.mrb[0].mxu0
    %v149 = vadd.f32 0.0, %v148
    %v150 = vpop.f32.mrb[0].mxu0
    %151 = vdwg.mxu0
    %154 = vrot.lane.b32.xlu0 %v146, 104
    %v155 = vpop.permute.xlu0 %154
    %156 = vrot.lane.b32.xlu0 %v149, 104
    %v157 = vpop.permute.xlu0 %156
    %160 = vrot.lane.b32.xlu0 %v146, 80
    %v161 = vpop.permute.xlu0 %160
    %162 = vrot.lane.b32.xlu0 %v149, 80
    %v163 = vpop.permute.xlu0 %162
    %166 = vrot.lane.b32.xlu0 %v146, 56
    %v167 = vpop.permute.xlu0 %166
    %168 = vrot.lane.b32.xlu0 %v149, 56
    %v169 = vpop.permute.xlu0 %168
    %v172 = vpack.c.bf16 %v146, %v146
    %v173 = vpack.c.bf16 %v149, %v149
    %v174 = vpack.c.bf16 %v155, %v155
    %v175 = vpack.c.bf16 %v157, %v157
    %v176 = vpack.c.bf16 %v161, %v161
    %v177 = vpack.c.bf16 %v163, %v163
    %v178 = vpack.c.bf16 %v167, %v167
    %v179 = vpack.c.bf16 %v169, %v169
    %v180 = vlaneseq
    %v181 = vshrl.u32 %v180, 7
    %v182 = vlaneseq
    %v183 = vand.u32 %v182, 127
    %vm184 = vcmp.ge.s32.totalorder %v181, %v183
    %v185 = vsel %vm184, 0.0, -1e+30
    %187 = vrot.lane.b32.xlu0 %v172, 120
    %v188 = vpop.permute.xlu0 %187
    %vm189 = vcmask 64512
    %v191 = vsel %vm189, %v172, 0
    %v194 = vsel %vm189, %v188, 0
    %196 = vmatprep.subr.bf16.mxu0 0
    %197 = vmatpush1.bf16.xpose.msra.mxu0 %v194
    %198 = vmatprep.subr.bf16.mxu0 0
    %199 = vmatpush1.bf16.xpose.msra.mxu0 0
    %200 = vmatprep.subr.bf16.mxu0 0
    %201 = vmatpush1.bf16.xpose.msra.mxu0 0
    %202 = vmatprep.subr.bf16.mxu0 0
    %203 = vmatpush1.bf16.xpose.msra.mxu0 0
    %204 = vmatprep.subr.bf16.mxu0 0
    %205 = vmatpush1.bf16.xpose.msra.mxu0 0
    %206 = vmatprep.subr.bf16.mxu0 0
    %207 = vmatpush1.bf16.xpose.msra.mxu0 0
    %208 = vmatprep.subr.bf16.mxu0 0
    %209 = vmatpush1.bf16.xpose.msra.mxu0 0
    %210 = vmatprep.subr.bf16.mxu0 0
    %211 = vmatpush1.bf16.xpose.msra.mxu0 0
    %212 = vmatprep.subr.bf16.mxu0 0
    %213 = vmatpush1.bf16.xpose.msra.mxu0 0
    %214 = vmatprep.subr.bf16.mxu0 0
    %215 = vmatpush1.bf16.xpose.msra.mxu0 0
    %216 = vmatprep.subr.bf16.mxu0 0
    %217 = vmatpush1.bf16.xpose.msra.mxu0 0
    %218 = vmatprep.subr.bf16.mxu0 0
    %219 = vmatpush1.bf16.xpose.msra.mxu0 0
    %220 = vmatprep.subr.bf16.mxu0 0
    %221 = vmatpush1.bf16.xpose.msra.mxu0 0
    %222 = vmatprep.subr.bf16.mxu0 0
    %223 = vmatpush1.bf16.xpose.msra.mxu0 0
    %224 = vmatprep.subr.bf16.mxu0 0
    %225 = vmatpush1.bf16.xpose.msra.mxu0 0
    %226 = vmatprep.subr.bf16.mxu0 0
    %227 = vmatpush1.bf16.xpose.msra.mxu0 0
    %228 = vmatprep.mubr.bf16.mxu0 0
    %229 = vmatmul.mubr.bf16.gmra.mrb[0].mxu0 %v191
    %v230 = vpop.f32.mrb[0].mxu0
    %v231 = vadd.f32 %v185, %v230
    %v232 = vpop.f32.mrb[0].mxu0
    %v233 = vpop.f32.mrb[0].mxu0
    %v234 = vpop.f32.mrb[0].mxu0
    %235 = vdwg.mxu0
    %237 = vrot.lane.b32.xlu0 %v173, 120
    %v238 = vpop.permute.xlu0 %237
    %v240 = vsel %vm189, %v173, 0
    %v243 = vsel %vm189, %v238, 0
    %245 = vmatprep.subr.bf16.mxu0 0
    %246 = vmatpush1.bf16.xpose.msra.mxu0 %v243
    %247 = vmatprep.subr.bf16.mxu0 0
    %248 = vmatpush1.bf16.xpose.msra.mxu0 0
    %249 = vmatprep.subr.bf16.mxu0 0
    %250 = vmatpush1.bf16.xpose.msra.mxu0 0
    %251 = vmatprep.subr.bf16.mxu0 0
    %252 = vmatpush1.bf16.xpose.msra.mxu0 0
    %253 = vmatprep.subr.bf16.mxu0 0
    %254 = vmatpush1.bf16.xpose.msra.mxu0 0
    %255 = vmatprep.subr.bf16.mxu0 0
    %256 = vmatpush1.bf16.xpose.msra.mxu0 0
    %257 = vmatprep.subr.bf16.mxu0 0
    %258 = vmatpush1.bf16.xpose.msra.mxu0 0
    %259 = vmatprep.subr.bf16.mxu0 0
    %260 = vmatpush1.bf16.xpose.msra.mxu0 0
    %261 = vmatprep.subr.bf16.mxu0 0
    %262 = vmatpush1.bf16.xpose.msra.mxu0 0
    %263 = vmatprep.subr.bf16.mxu0 0
    %264 = vmatpush1.bf16.xpose.msra.mxu0 0
    %265 = vmatprep.subr.bf16.mxu0 0
    %266 = vmatpush1.bf16.xpose.msra.mxu0 0
    %267 = vmatprep.subr.bf16.mxu0 0
    %268 = vmatpush1.bf16.xpose.msra.mxu0 0
    %269 = vmatprep.subr.bf16.mxu0 0
    %270 = vmatpush1.bf16.xpose.msra.mxu0 0
    %271 = vmatprep.subr.bf16.mxu0 0
    %272 = vmatpush1.bf16.xpose.msra.mxu0 0
    %273 = vmatprep.subr.bf16.mxu0 0
    %274 = vmatpush1.bf16.xpose.msra.mxu0 0
    %275 = vmatprep.subr.bf16.mxu0 0
    %276 = vmatpush1.bf16.xpose.msra.mxu0 0
    %277 = vmatprep.mubr.bf16.mxu0 0
    %278 = vmatmul.mubr.bf16.gmra.mrb[0].mxu0 %v240
    %v279 = vpop.f32.mrb[0].mxu0
    %v280 = vadd.f32 %v185, %v279
    %v281 = vpop.f32.mrb[0].mxu0
    %v282 = vpop.f32.mrb[0].mxu0
    %v283 = vpop.f32.mrb[0].mxu0
    %284 = vdwg.mxu0
    %286 = vrot.lane.b32.xlu0 %v174, 120
    %v287 = vpop.permute.xlu0 %286
    %v289 = vsel %vm189, %v174, 0
    %v292 = vsel %vm189, %v287, 0
    %294 = vmatprep.subr.bf16.mxu0 0
    %295 = vmatpush1.bf16.xpose.msra.mxu0 %v292
    %296 = vmatprep.subr.bf16.mxu0 0
    %297 = vmatpush1.bf16.xpose.msra.mxu0 0
    %298 = vmatprep.subr.bf16.mxu0 0
    %299 = vmatpush1.bf16.xpose.msra.mxu0 0
    %300 = vmatprep.subr.bf16.mxu0 0
    %301 = vmatpush1.bf16.xpose.msra.mxu0 0
    %302 = vmatprep.subr.bf16.mxu0 0
    %303 = vmatpush1.bf16.xpose.msra.mxu0 0
    %304 = vmatprep.subr.bf16.mxu0 0
    %305 = vmatpush1.bf16.xpose.msra.mxu0 0
    %306 = vmatprep.subr.bf16.mxu0 0
    %307 = vmatpush1.bf16.xpose.msra.mxu0 0
    %308 = vmatprep.subr.bf16.mxu0 0
    %309 = vmatpush1.bf16.xpose.msra.mxu0 0
    %310 = vmatprep.subr.bf16.mxu0 0
    %311 = vmatpush1.bf16.xpose.msra.mxu0 0
    %312 = vmatprep.subr.bf16.mxu0 0
    %313 = vmatpush1.bf16.xpose.msra.mxu0 0
    %314 = vmatprep.subr.bf16.mxu0 0
    %315 = vmatpush1.bf16.xpose.msra.mxu0 0
    %316 = vmatprep.subr.bf16.mxu0 0
    %317 = vmatpush1.bf16.xpose.msra.mxu0 0
    %318 = vmatprep.subr.bf16.mxu0 0
    %319 = vmatpush1.bf16.xpose.msra.mxu0 0
    %320 = vmatprep.subr.bf16.mxu0 0
    %321 = vmatpush1.bf16.xpose.msra.mxu0 0
    %322 = vmatprep.subr.bf16.mxu0 0
    %323 = vmatpush1.bf16.xpose.msra.mxu0 0
    %324 = vmatprep.subr.bf16.mxu0 0
    %325 = vmatpush1.bf16.xpose.msra.mxu0 0
    %326 = vmatprep.mubr.bf16.mxu0 0
    %327 = vmatmul.mubr.bf16.gmra.mrb[0].mxu0 %v289
    %v328 = vpop.f32.mrb[0].mxu0
    %v329 = vadd.f32 %v185, %v328
    %v330 = vpop.f32.mrb[0].mxu0
    %v331 = vpop.f32.mrb[0].mxu0
    %v332 = vpop.f32.mrb[0].mxu0
    %333 = vdwg.mxu0
    %335 = vrot.lane.b32.xlu0 %v175, 120
    %v336 = vpop.permute.xlu0 %335
    %v338 = vsel %vm189, %v175, 0
    %v341 = vsel %vm189, %v336, 0
    %343 = vmatprep.subr.bf16.mxu0 0
    %344 = vmatpush1.bf16.xpose.msra.mxu0 %v341
    %345 = vmatprep.subr.bf16.mxu0 0
    %346 = vmatpush1.bf16.xpose.msra.mxu0 0
    %347 = vmatprep.subr.bf16.mxu0 0
    %348 = vmatpush1.bf16.xpose.msra.mxu0 0
    %349 = vmatprep.subr.bf16.mxu0 0
    %350 = vmatpush1.bf16.xpose.msra.mxu0 0
    %351 = vmatprep.subr.bf16.mxu0 0
    %352 = vmatpush1.bf16.xpose.msra.mxu0 0
    %353 = vmatprep.subr.bf16.mxu0 0
    %354 = vmatpush1.bf16.xpose.msra.mxu0 0
    %355 = vmatprep.subr.bf16.mxu0 0
    %356 = vmatpush1.bf16.xpose.msra.mxu0 0
    %357 = vmatprep.subr.bf16.mxu0 0
    %358 = vmatpush1.bf16.xpose.msra.mxu0 0
    %359 = vmatprep.subr.bf16.mxu0 0
    %360 = vmatpush1.bf16.xpose.msra.mxu0 0
    %361 = vmatprep.subr.bf16.mxu0 0
    %362 = vmatpush1.bf16.xpose.msra.mxu0 0
    %363 = vmatprep.subr.bf16.mxu0 0
    %364 = vmatpush1.bf16.xpose.msra.mxu0 0
    %365 = vmatprep.subr.bf16.mxu0 0
    %366 = vmatpush1.bf16.xpose.msra.mxu0 0
    %367 = vmatprep.subr.bf16.mxu0 0
    %368 = vmatpush1.bf16.xpose.msra.mxu0 0
    %369 = vmatprep.subr.bf16.mxu0 0
    %370 = vmatpush1.bf16.xpose.msra.mxu0 0
    %371 = vmatprep.subr.bf16.mxu0 0
    %372 = vmatpush1.bf16.xpose.msra.mxu0 0
    %373 = vmatprep.subr.bf16.mxu0 0
    %374 = vmatpush1.bf16.xpose.msra.mxu0 0
    %375 = vmatprep.mubr.bf16.mxu0 0
    %376 = vmatmul.mubr.bf16.gmra.mrb[0].mxu0 %v338
    %v377 = vpop.f32.mrb[0].mxu0
    %v378 = vadd.f32 %v185, %v377
    %v379 = vpop.f32.mrb[0].mxu0
    %v380 = vpop.f32.mrb[0].mxu0
    %v381 = vpop.f32.mrb[0].mxu0
    %382 = vdwg.mxu0
    %384 = vrot.lane.b32.xlu0 %v176, 120
    %v385 = vpop.permute.xlu0 %384
    %v387 = vsel %vm189, %v176, 0
    %v390 = vsel %vm189, %v385, 0
    %392 = vmatprep.subr.bf16.mxu0 0
    %393 = vmatpush1.bf16.xpose.msra.mxu0 %v390
    %394 = vmatprep.subr.bf16.mxu0 0
    %395 = vmatpush1.bf16.xpose.msra.mxu0 0
    %396 = vmatprep.subr.bf16.mxu0 0
    %397 = vmatpush1.bf16.xpose.msra.mxu0 0
    %398 = vmatprep.subr.bf16.mxu0 0
    %399 = vmatpush1.bf16.xpose.msra.mxu0 0
    %400 = vmatprep.subr.bf16.mxu0 0
    %401 = vmatpush1.bf16.xpose.msra.mxu0 0
    %402 = vmatprep.subr.bf16.mxu0 0
    %403 = vmatpush1.bf16.xpose.msra.mxu0 0
    %404 = vmatprep.subr.bf16.mxu0 0
    %405 = vmatpush1.bf16.xpose.msra.mxu0 0
    %406 = vmatprep.subr.bf16.mxu0 0
    %407 = vmatpush1.bf16.xpose.msra.mxu0 0
    %408 = vmatprep.subr.bf16.mxu0 0
    %409 = vmatpush1.bf16.xpose.msra.mxu0 0
    %410 = vmatprep.subr.bf16.mxu0 0
    %411 = vmatpush1.bf16.xpose.msra.mxu0 0
    %412 = vmatprep.subr.bf16.mxu0 0
    %413 = vmatpush1.bf16.xpose.msra.mxu0 0
    %414 = vmatprep.subr.bf16.mxu0 0
    %415 = vmatpush1.bf16.xpose.msra.mxu0 0
    %416 = vmatprep.subr.bf16.mxu0 0
    %417 = vmatpush1.bf16.xpose.msra.mxu0 0
    %418 = vmatprep.subr.bf16.mxu0 0
    %419 = vmatpush1.bf16.xpose.msra.mxu0 0
    %420 = vmatprep.subr.bf16.mxu0 0
    %421 = vmatpush1.bf16.xpose.msra.mxu0 0
    %422 = vmatprep.subr.bf16.mxu0 0
    %423 = vmatpush1.bf16.xpose.msra.mxu0 0
    %424 = vmatprep.mubr.bf16.mxu0 0
    %425 = vmatmul.mubr.bf16.gmra.mrb[0].mxu0 %v387
    %v426 = vpop.f32.mrb[0].mxu0
    %v427 = vadd.f32 %v185, %v426
    %v428 = vpop.f32.mrb[0].mxu0
    %v429 = vpop.f32.mrb[0].mxu0
    %v430 = vpop.f32.mrb[0].mxu0
    %431 = vdwg.mxu0
    %433 = vrot.lane.b32.xlu0 %v177, 120
    %v434 = vpop.permute.xlu0 %433
    %v436 = vsel %vm189, %v177, 0
    %v439 = vsel %vm189, %v434, 0
    %441 = vmatprep.subr.bf16.mxu0 0
    %442 = vmatpush1.bf16.xpose.msra.mxu0 %v439
    %443 = vmatprep.subr.bf16.mxu0 0
    %444 = vmatpush1.bf16.xpose.msra.mxu0 0
    %445 = vmatprep.subr.bf16.mxu0 0
    %446 = vmatpush1.bf16.xpose.msra.mxu0 0
    %447 = vmatprep.subr.bf16.mxu0 0
    %448 = vmatpush1.bf16.xpose.msra.mxu0 0
    %449 = vmatprep.subr.bf16.mxu0 0
    %450 = vmatpush1.bf16.xpose.msra.mxu0 0
    %451 = vmatprep.subr.bf16.mxu0 0
    %452 = vmatpush1.bf16.xpose.msra.mxu0 0
    %453 = vmatprep.subr.bf16.mxu0 0
    %454 = vmatpush1.bf16.xpose.msra.mxu0 0
    %455 = vmatprep.subr.bf16.mxu0 0
    %456 = vmatpush1.bf16.xpose.msra.mxu0 0
    %457 = vmatprep.subr.bf16.mxu0 0
    %458 = vmatpush1.bf16.xpose.msra.mxu0 0
    %459 = vmatprep.subr.bf16.mxu0 0
    %460 = vmatpush1.bf16.xpose.msra.mxu0 0
    %461 = vmatprep.subr.bf16.mxu0 0
    %462 = vmatpush1.bf16.xpose.msra.mxu0 0
    %463 = vmatprep.subr.bf16.mxu0 0
    %464 = vmatpush1.bf16.xpose.msra.mxu0 0
    %465 = vmatprep.subr.bf16.mxu0 0
    %466 = vmatpush1.bf16.xpose.msra.mxu0 0
    %467 = vmatprep.subr.bf16.mxu0 0
    %468 = vmatpush1.bf16.xpose.msra.mxu0 0
    %469 = vmatprep.subr.bf16.mxu0 0
    %470 = vmatpush1.bf16.xpose.msra.mxu0 0
    %471 = vmatprep.subr.bf16.mxu0 0
    %472 = vmatpush1.bf16.xpose.msra.mxu0 0
    %473 = vmatprep.mubr.bf16.mxu0 0
    %474 = vmatmul.mubr.bf16.gmra.mrb[0].mxu0 %v436
    %v475 = vpop.f32.mrb[0].mxu0
    %v476 = vadd.f32 %v185, %v475
    %v477 = vpop.f32.mrb[0].mxu0
    %v478 = vpop.f32.mrb[0].mxu0
    %v479 = vpop.f32.mrb[0].mxu0
    %480 = vdwg.mxu0
    %482 = vrot.lane.b32.xlu0 %v178, 120
    %v483 = vpop.permute.xlu0 %482
    %v485 = vsel %vm189, %v178, 0
    %v488 = vsel %vm189, %v483, 0
    %490 = vmatprep.subr.bf16.mxu0 0
    %491 = vmatpush1.bf16.xpose.msra.mxu0 %v488
    %492 = vmatprep.subr.bf16.mxu0 0
    %493 = vmatpush1.bf16.xpose.msra.mxu0 0
    %494 = vmatprep.subr.bf16.mxu0 0
    %495 = vmatpush1.bf16.xpose.msra.mxu0 0
    %496 = vmatprep.subr.bf16.mxu0 0
    %497 = vmatpush1.bf16.xpose.msra.mxu0 0
    %498 = vmatprep.subr.bf16.mxu0 0
    %499 = vmatpush1.bf16.xpose.msra.mxu0 0
    %500 = vmatprep.subr.bf16.mxu0 0
    %501 = vmatpush1.bf16.xpose.msra.mxu0 0
    %502 = vmatprep.subr.bf16.mxu0 0
    %503 = vmatpush1.bf16.xpose.msra.mxu0 0
    %504 = vmatprep.subr.bf16.mxu0 0
    %505 = vmatpush1.bf16.xpose.msra.mxu0 0
    %506 = vmatprep.subr.bf16.mxu0 0
    %507 = vmatpush1.bf16.xpose.msra.mxu0 0
    %508 = vmatprep.subr.bf16.mxu0 0
    %509 = vmatpush1.bf16.xpose.msra.mxu0 0
    %510 = vmatprep.subr.bf16.mxu0 0
    %511 = vmatpush1.bf16.xpose.msra.mxu0 0
    %512 = vmatprep.subr.bf16.mxu0 0
    %513 = vmatpush1.bf16.xpose.msra.mxu0 0
    %514 = vmatprep.subr.bf16.mxu0 0
    %515 = vmatpush1.bf16.xpose.msra.mxu0 0
    %516 = vmatprep.subr.bf16.mxu0 0
    %517 = vmatpush1.bf16.xpose.msra.mxu0 0
    %518 = vmatprep.subr.bf16.mxu0 0
    %519 = vmatpush1.bf16.xpose.msra.mxu0 0
    %520 = vmatprep.subr.bf16.mxu0 0
    %521 = vmatpush1.bf16.xpose.msra.mxu0 0
    %522 = vmatprep.mubr.bf16.mxu0 0
    %523 = vmatmul.mubr.bf16.gmra.mrb[0].mxu0 %v485
    %v524 = vpop.f32.mrb[0].mxu0
    %v525 = vadd.f32 %v185, %v524
    %v526 = vpop.f32.mrb[0].mxu0
    %v527 = vpop.f32.mrb[0].mxu0
    %v528 = vpop.f32.mrb[0].mxu0
    %529 = vdwg.mxu0
    %531 = vrot.lane.b32.xlu0 %v179, 120
    %v532 = vpop.permute.xlu0 %531
    %v534 = vsel %vm189, %v179, 0
    %v537 = vsel %vm189, %v532, 0
    %539 = vmatprep.subr.bf16.mxu0 0
    %540 = vmatpush1.bf16.xpose.msra.mxu0 %v537
    %541 = vmatprep.subr.bf16.mxu0 0
    %542 = vmatpush1.bf16.xpose.msra.mxu0 0
    %543 = vmatprep.subr.bf16.mxu0 0
    %544 = vmatpush1.bf16.xpose.msra.mxu0 0
    %545 = vmatprep.subr.bf16.mxu0 0
    %546 = vmatpush1.bf16.xpose.msra.mxu0 0
    %547 = vmatprep.subr.bf16.mxu0 0
    %548 = vmatpush1.bf16.xpose.msra.mxu0 0
    %549 = vmatprep.subr.bf16.mxu0 0
    %550 = vmatpush1.bf16.xpose.msra.mxu0 0
    %551 = vmatprep.subr.bf16.mxu0 0
    %552 = vmatpush1.bf16.xpose.msra.mxu0 0
    %553 = vmatprep.subr.bf16.mxu0 0
    %554 = vmatpush1.bf16.xpose.msra.mxu0 0
    %555 = vmatprep.subr.bf16.mxu0 0
    %556 = vmatpush1.bf16.xpose.msra.mxu0 0
    %557 = vmatprep.subr.bf16.mxu0 0
    %558 = vmatpush1.bf16.xpose.msra.mxu0 0
    %559 = vmatprep.subr.bf16.mxu0 0
    %560 = vmatpush1.bf16.xpose.msra.mxu0 0
    %561 = vmatprep.subr.bf16.mxu0 0
    %562 = vmatpush1.bf16.xpose.msra.mxu0 0
    %563 = vmatprep.subr.bf16.mxu0 0
    %564 = vmatpush1.bf16.xpose.msra.mxu0 0
    %565 = vmatprep.subr.bf16.mxu0 0
    %566 = vmatpush1.bf16.xpose.msra.mxu0 0
    %567 = vmatprep.subr.bf16.mxu0 0
    %568 = vmatpush1.bf16.xpose.msra.mxu0 0
    %569 = vmatprep.subr.bf16.mxu0 0
    %570 = vmatpush1.bf16.xpose.msra.mxu0 0
    %571 = vmatprep.mubr.bf16.mxu0 0
    %572 = vmatmul.mubr.bf16.gmra.mrb[0].mxu0 %v534
    %v573 = vpop.f32.mrb[0].mxu0
    %v574 = vadd.f32 %v185, %v573
    %v575 = vpop.f32.mrb[0].mxu0
    %v576 = vpop.f32.mrb[0].mxu0
    %v577 = vpop.f32.mrb[0].mxu0
    %578 = vdwg.mxu0
    %v579 = vsel %vm189, %v231, -inf
    %580 = vmax.xlane.f32.xlu0 %v579
    %v581 = vpop.xlane.xlu0 %580
    %v582 = vsel %vm189, %v280, -inf
    %583 = vmax.xlane.f32.xlu0 %v582
    %v584 = vpop.xlane.xlu0 %583
    %v585 = vsel %vm189, %v329, -inf
    %586 = vmax.xlane.f32.xlu0 %v585
    %v587 = vpop.xlane.xlu0 %586
    %v588 = vsel %vm189, %v378, -inf
    %589 = vmax.xlane.f32.xlu0 %v588
    %v590 = vpop.xlane.xlu0 %589
    %v591 = vsel %vm189, %v427, -inf
    %592 = vmax.xlane.f32.xlu0 %v591
    %v593 = vpop.xlane.xlu0 %592
    %v594 = vsel %vm189, %v476, -inf
    %595 = vmax.xlane.f32.xlu0 %v594
    %v596 = vpop.xlane.xlu0 %595
    %v597 = vsel %vm189, %v525, -inf
    %598 = vmax.xlane.f32.xlu0 %v597
    %v599 = vpop.xlane.xlu0 %598
    %v600 = vsel %vm189, %v574, -inf
    %601 = vmax.xlane.f32.xlu0 %v600
    %v602 = vpop.xlane.xlu0 %601
    %v603 = vsub.f32 %v231, %v581
    %v604 = vsub.f32 %v280, %v584
    %v605 = vsub.f32 %v329, %v587
    %v606 = vsub.f32 %v378, %v590
    %v607 = vsub.f32 %v427, %v593
    %v608 = vsub.f32 %v476, %v596
    %v609 = vsub.f32 %v525, %v599
    %v610 = vsub.f32 %v574, %v602
    %v611 = vmul.f32 %v603, 1.442695
    %v612 = vpow.pop %v611
    %v613 = vmul.f32 %v604, 1.442695
    %v614 = vpow.pop %v613
    %v615 = vmul.f32 %v605, 1.442695
    %v616 = vpow.pop %v615
    %v617 = vmul.f32 %v606, 1.442695
    %v618 = vpow.pop %v617
    %v619 = vmul.f32 %v607, 1.442695
    %v620 = vpow.pop %v619
    %v621 = vmul.f32 %v608, 1.442695
    %v622 = vpow.pop %v621
    %v623 = vmul.f32 %v609, 1.442695
    %v624 = vpow.pop %v623
    %v625 = vmul.f32 %v610, 1.442695
    %v626 = vpow.pop %v625
    %v627 = vsel %vm189, %v612, 0.0
    %628 = vadd.xlane.f32.xlu0 %v627
    %v629 = vpop.xlane.xlu0 %628
    %v630 = vsel %vm189, %v614, 0.0
    %631 = vadd.xlane.f32.xlu0 %v630
    %v632 = vpop.xlane.xlu0 %631
    %v633 = vsel %vm189, %v616, 0.0
    %634 = vadd.xlane.f32.xlu0 %v633
    %v635 = vpop.xlane.xlu0 %634
    %v636 = vsel %vm189, %v618, 0.0
    %637 = vadd.xlane.f32.xlu0 %v636
    %v638 = vpop.xlane.xlu0 %637
    %v639 = vsel %vm189, %v620, 0.0
    %640 = vadd.xlane.f32.xlu0 %v639
    %v641 = vpop.xlane.xlu0 %640
    %v642 = vsel %vm189, %v622, 0.0
    %643 = vadd.xlane.f32.xlu0 %v642
    %v644 = vpop.xlane.xlu0 %643
    %v645 = vsel %vm189, %v624, 0.0
    %646 = vadd.xlane.f32.xlu0 %v645
    %v647 = vpop.xlane.xlu0 %646
    %v648 = vsel %vm189, %v626, 0.0
    %649 = vadd.xlane.f32.xlu0 %v648
    %v650 = vpop.xlane.xlu0 %649
    %v651 = vrcp.pop %v629
    %v652 = vrcp.pop %v632
    %v653 = vrcp.pop %v635
    %v654 = vrcp.pop %v638
    %v655 = vrcp.pop %v641
    %v656 = vrcp.pop %v644
    %v657 = vrcp.pop %v647
    %v658 = vrcp.pop %v650
    %v659 = vmul.f32 %v612, %v651
    %v660 = vmul.f32 %v614, %v652
    %v661 = vmul.f32 %v616, %v653
    %v662 = vmul.f32 %v618, %v654
    %v663 = vmul.f32 %v620, %v655
    %v664 = vmul.f32 %v622, %v656
    %v665 = vmul.f32 %v624, %v657
    %v666 = vmul.f32 %v626, %v658
    %v667 = vpack.c.bf16 %v659, %v659
    %v668 = vpack.c.bf16 %v660, %v660
    %v669 = vpack.c.bf16 %v661, %v661
    %v670 = vpack.c.bf16 %v662, %v662
    %v671 = vpack.c.bf16 %v663, %v663
    %v672 = vpack.c.bf16 %v664, %v664
    %v673 = vpack.c.bf16 %v665, %v665
    %v674 = vpack.c.bf16 %v666, %v666
    %675 = vrot.lane.b32.xlu0 %v172, 112
    %v676 = vpop.permute.xlu0 %675
    %v678 = vsel %vm189, %v667, 0
    %vm680 = vcmask 1043456
    %v682 = vsel %vm680, %v676, 0
    %684 = vmatprep.subr.bf16.mxu0 0
    %685 = vmatpush1.bf16.msra.mxu0 %v682
    %686 = vmatprep.subr.bf16.mxu0 0
    %687 = vmatpush1.bf16.msra.mxu0 0
    %688 = vmatprep.subr.bf16.mxu0 0
    %689 = vmatpush1.bf16.msra.mxu0 0
    %690 = vmatprep.subr.bf16.mxu0 0
    %691 = vmatpush1.bf16.msra.mxu0 0
    %692 = vmatprep.subr.bf16.mxu0 0
    %693 = vmatpush1.bf16.msra.mxu0 0
    %694 = vmatprep.subr.bf16.mxu0 0
    %695 = vmatpush1.bf16.msra.mxu0 0
    %696 = vmatprep.subr.bf16.mxu0 0
    %697 = vmatpush1.bf16.msra.mxu0 0
    %698 = vmatprep.subr.bf16.mxu0 0
    %699 = vmatpush1.bf16.msra.mxu0 0
    %700 = vmatprep.subr.bf16.mxu0 0
    %701 = vmatpush1.bf16.msra.mxu0 0
    %702 = vmatprep.subr.bf16.mxu0 0
    %703 = vmatpush1.bf16.msra.mxu0 0
    %704 = vmatprep.subr.bf16.mxu0 0
    %705 = vmatpush1.bf16.msra.mxu0 0
    %706 = vmatprep.subr.bf16.mxu0 0
    %707 = vmatpush1.bf16.msra.mxu0 0
    %708 = vmatprep.subr.bf16.mxu0 0
    %709 = vmatpush1.bf16.msra.mxu0 0
    %710 = vmatprep.subr.bf16.mxu0 0
    %711 = vmatpush1.bf16.msra.mxu0 0
    %712 = vmatprep.subr.bf16.mxu0 0
    %713 = vmatpush1.bf16.msra.mxu0 0
    %714 = vmatprep.subr.bf16.mxu0 0
    %715 = vmatpush1.bf16.msra.mxu0 0
    %716 = vmatprep.mubr.bf16.mxu0 0
    %717 = vmatmul.mubr.bf16.gmra.mrb[0].mxu0 %v678
    %v718 = vpop.f32.mrb[0].mxu0
    %v719 = vadd.f32 0.0, %v718
    %v720 = vpop.f32.mrb[0].mxu0
    %v721 = vpop.f32.mrb[0].mxu0
    %v722 = vpop.f32.mrb[0].mxu0
    %723 = vdwg.mxu0
    %724 = vrot.lane.b32.xlu0 %v173, 112
    %v725 = vpop.permute.xlu0 %724
    %v727 = vsel %vm189, %v668, 0
    %v730 = vsel %vm680, %v725, 0
    %732 = vmatprep.subr.bf16.mxu0 0
    %733 = vmatpush1.bf16.msra.mxu0 %v730
    %734 = vmatprep.subr.bf16.mxu0 0
    %735 = vmatpush1.bf16.msra.mxu0 0
    %736 = vmatprep.subr.bf16.mxu0 0
    %737 = vmatpush1.bf16.msra.mxu0 0
    %738 = vmatprep.subr.bf16.mxu0 0
    %739 = vmatpush1.bf16.msra.mxu0 0
    %740 = vmatprep.subr.bf16.mxu0 0
    %741 = vmatpush1.bf16.msra.mxu0 0
    %742 = vmatprep.subr.bf16.mxu0 0
    %743 = vmatpush1.bf16.msra.mxu0 0
    %744 = vmatprep.subr.bf16.mxu0 0
    %745 = vmatpush1.bf16.msra.mxu0 0
    %746 = vmatprep.subr.bf16.mxu0 0
    %747 = vmatpush1.bf16.msra.mxu0 0
    %748 = vmatprep.subr.bf16.mxu0 0
    %749 = vmatpush1.bf16.msra.mxu0 0
    %750 = vmatprep.subr.bf16.mxu0 0
    %751 = vmatpush1.bf16.msra.mxu0 0
    %752 = vmatprep.subr.bf16.mxu0 0
    %753 = vmatpush1.bf16.msra.mxu0 0
    %754 = vmatprep.subr.bf16.mxu0 0
    %755 = vmatpush1.bf16.msra.mxu0 0
    %756 = vmatprep.subr.bf16.mxu0 0
    %757 = vmatpush1.bf16.msra.mxu0 0
    %758 = vmatprep.subr.bf16.mxu0 0
    %759 = vmatpush1.bf16.msra.mxu0 0
    %760 = vmatprep.subr.bf16.mxu0 0
    %761 = vmatpush1.bf16.msra.mxu0 0
    %762 = vmatprep.subr.bf16.mxu0 0
    %763 = vmatpush1.bf16.msra.mxu0 0
    %764 = vmatprep.mubr.bf16.mxu0 0
    %765 = vmatmul.mubr.bf16.gmra.mrb[0].mxu0 %v727
    %v766 = vpop.f32.mrb[0].mxu0
    %v767 = vadd.f32 0.0, %v766
    %v768 = vpop.f32.mrb[0].mxu0
    %v769 = vpop.f32.mrb[0].mxu0
    %v770 = vpop.f32.mrb[0].mxu0
    %771 = vdwg.mxu0
    %772 = vrot.lane.b32.xlu0 %v174, 112
    %v773 = vpop.permute.xlu0 %772
    %v775 = vsel %vm189, %v669, 0
    %v778 = vsel %vm680, %v773, 0
    %780 = vmatprep.subr.bf16.mxu0 0
    %781 = vmatpush1.bf16.msra.mxu0 %v778
    %782 = vmatprep.subr.bf16.mxu0 0
    %783 = vmatpush1.bf16.msra.mxu0 0
    %784 = vmatprep.subr.bf16.mxu0 0
    %785 = vmatpush1.bf16.msra.mxu0 0
    %786 = vmatprep.subr.bf16.mxu0 0
    %787 = vmatpush1.bf16.msra.mxu0 0
    %788 = vmatprep.subr.bf16.mxu0 0
    %789 = vmatpush1.bf16.msra.mxu0 0
    %790 = vmatprep.subr.bf16.mxu0 0
    %791 = vmatpush1.bf16.msra.mxu0 0
    %792 = vmatprep.subr.bf16.mxu0 0
    %793 = vmatpush1.bf16.msra.mxu0 0
    %794 = vmatprep.subr.bf16.mxu0 0
    %795 = vmatpush1.bf16.msra.mxu0 0
    %796 = vmatprep.subr.bf16.mxu0 0
    %797 = vmatpush1.bf16.msra.mxu0 0
    %798 = vmatprep.subr.bf16.mxu0 0
    %799 = vmatpush1.bf16.msra.mxu0 0
    %800 = vmatprep.subr.bf16.mxu0 0
    %801 = vmatpush1.bf16.msra.mxu0 0
    %802 = vmatprep.subr.bf16.mxu0 0
    %803 = vmatpush1.bf16.msra.mxu0 0
    %804 = vmatprep.subr.bf16.mxu0 0
    %805 = vmatpush1.bf16.msra.mxu0 0
    %806 = vmatprep.subr.bf16.mxu0 0
    %807 = vmatpush1.bf16.msra.mxu0 0
    %808 = vmatprep.subr.bf16.mxu0 0
    %809 = vmatpush1.bf16.msra.mxu0 0
    %810 = vmatprep.subr.bf16.mxu0 0
    %811 = vmatpush1.bf16.msra.mxu0 0
    %812 = vmatprep.mubr.bf16.mxu0 0
    %813 = vmatmul.mubr.bf16.gmra.mrb[0].mxu0 %v775
    %v814 = vpop.f32.mrb[0].mxu0
    %v815 = vadd.f32 0.0, %v814
    %v816 = vpop.f32.mrb[0].mxu0
    %v817 = vpop.f32.mrb[0].mxu0
    %v818 = vpop.f32.mrb[0].mxu0
    %819 = vdwg.mxu0
    %820 = vrot.lane.b32.xlu0 %v175, 112
    %v821 = vpop.permute.xlu0 %820
    %v823 = vsel %vm189, %v670, 0
    %v826 = vsel %vm680, %v821, 0
    %828 = vmatprep.subr.bf16.mxu0 0
    %829 = vmatpush1.bf16.msra.mxu0 %v826
    %830 = vmatprep.subr.bf16.mxu0 0
    %831 = vmatpush1.bf16.msra.mxu0 0
    %832 = vmatprep.subr.bf16.mxu0 0
    %833 = vmatpush1.bf16.msra.mxu0 0
    %834 = vmatprep.subr.bf16.mxu0 0
    %835 = vmatpush1.bf16.msra.mxu0 0
    %836 = vmatprep.subr.bf16.mxu0 0
    %837 = vmatpush1.bf16.msra.mxu0 0
    %838 = vmatprep.subr.bf16.mxu0 0
    %839 = vmatpush1.bf16.msra.mxu0 0
    %840 = vmatprep.subr.bf16.mxu0 0
    %841 = vmatpush1.bf16.msra.mxu0 0
    %842 = vmatprep.subr.bf16.mxu0 0
    %843 = vmatpush1.bf16.msra.mxu0 0
    %844 = vmatprep.subr.bf16.mxu0 0
    %845 = vmatpush1.bf16.msra.mxu0 0
    %846 = vmatprep.subr.bf16.mxu0 0
    %847 = vmatpush1.bf16.msra.mxu0 0
    %848 = vmatprep.subr.bf16.mxu0 0
    %849 = vmatpush1.bf16.msra.mxu0 0
    %850 = vmatprep.subr.bf16.mxu0 0
    %851 = vmatpush1.bf16.msra.mxu0 0
    %852 = vmatprep.subr.bf16.mxu0 0
    %853 = vmatpush1.bf16.msra.mxu0 0
    %854 = vmatprep.subr.bf16.mxu0 0
    %855 = vmatpush1.bf16.msra.mxu0 0
    %856 = vmatprep.subr.bf16.mxu0 0
    %857 = vmatpush1.bf16.msra.mxu0 0
    %858 = vmatprep.subr.bf16.mxu0 0
    %859 = vmatpush1.bf16.msra.mxu0 0
    %860 = vmatprep.mubr.bf16.mxu0 0
    %861 = vmatmul.mubr.bf16.gmra.mrb[0].mxu0 %v823
    %v862 = vpop.f32.mrb[0].mxu0
    %v863 = vadd.f32 0.0, %v862
    %v864 = vpop.f32.mrb[0].mxu0
    %v865 = vpop.f32.mrb[0].mxu0
    %v866 = vpop.f32.mrb[0].mxu0
    %867 = vdwg.mxu0
    %868 = vrot.lane.b32.xlu0 %v176, 112
    %v869 = vpop.permute.xlu0 %868
    %v871 = vsel %vm189, %v671, 0
    %v874 = vsel %vm680, %v869, 0
    %876 = vmatprep.subr.bf16.mxu0 0
    %877 = vmatpush1.bf16.msra.mxu0 %v874
    %878 = vmatprep.subr.bf16.mxu0 0
    %879 = vmatpush1.bf16.msra.mxu0 0
    %880 = vmatprep.subr.bf16.mxu0 0
    %881 = vmatpush1.bf16.msra.mxu0 0
    %882 = vmatprep.subr.bf16.mxu0 0
    %883 = vmatpush1.bf16.msra.mxu0 0
    %884 = vmatprep.subr.bf16.mxu0 0
    %885 = vmatpush1.bf16.msra.mxu0 0
    %886 = vmatprep.subr.bf16.mxu0 0
    %887 = vmatpush1.bf16.msra.mxu0 0
    %888 = vmatprep.subr.bf16.mxu0 0
    %889 = vmatpush1.bf16.msra.mxu0 0
    %890 = vmatprep.subr.bf16.mxu0 0
    %891 = vmatpush1.bf16.msra.mxu0 0
    %892 = vmatprep.subr.bf16.mxu0 0
    %893 = vmatpush1.bf16.msra.mxu0 0
    %894 = vmatprep.subr.bf16.mxu0 0
    %895 = vmatpush1.bf16.msra.mxu0 0
    %896 = vmatprep.subr.bf16.mxu0 0
    %897 = vmatpush1.bf16.msra.mxu0 0
    %898 = vmatprep.subr.bf16.mxu0 0
    %899 = vmatpush1.bf16.msra.mxu0 0
    %900 = vmatprep.subr.bf16.mxu0 0
    %901 = vmatpush1.bf16.msra.mxu0 0
    %902 = vmatprep.subr.bf16.mxu0 0
    %903 = vmatpush1.bf16.msra.mxu0 0
    %904 = vmatprep.subr.bf16.mxu0 0
    %905 = vmatpush1.bf16.msra.mxu0 0
    %906 = vmatprep.subr.bf16.mxu0 0
    %907 = vmatpush1.bf16.msra.mxu0 0
    %908 = vmatprep.mubr.bf16.mxu0 0
    %909 = vmatmul.mubr.bf16.gmra.mrb[0].mxu0 %v871
    %v910 = vpop.f32.mrb[0].mxu0
    %v911 = vadd.f32 0.0, %v910
    %v912 = vpop.f32.mrb[0].mxu0
    %v913 = vpop.f32.mrb[0].mxu0
    %v914 = vpop.f32.mrb[0].mxu0
    %915 = vdwg.mxu0
    %916 = vrot.lane.b32.xlu0 %v177, 112
    %v917 = vpop.permute.xlu0 %916
    %v919 = vsel %vm189, %v672, 0
    %v922 = vsel %vm680, %v917, 0
    %924 = vmatprep.subr.bf16.mxu0 0
    %925 = vmatpush1.bf16.msra.mxu0 %v922
    %926 = vmatprep.subr.bf16.mxu0 0
    %927 = vmatpush1.bf16.msra.mxu0 0
    %928 = vmatprep.subr.bf16.mxu0 0
    %929 = vmatpush1.bf16.msra.mxu0 0
    %930 = vmatprep.subr.bf16.mxu0 0
    %931 = vmatpush1.bf16.msra.mxu0 0
    %932 = vmatprep.subr.bf16.mxu0 0
    %933 = vmatpush1.bf16.msra.mxu0 0
    %934 = vmatprep.subr.bf16.mxu0 0
    %935 = vmatpush1.bf16.msra.mxu0 0
    %936 = vmatprep.subr.bf16.mxu0 0
    %937 = vmatpush1.bf16.msra.mxu0 0
    %938 = vmatprep.subr.bf16.mxu0 0
    %939 = vmatpush1.bf16.msra.mxu0 0
    %940 = vmatprep.subr.bf16.mxu0 0
    %941 = vmatpush1.bf16.msra.mxu0 0
    %942 = vmatprep.subr.bf16.mxu0 0
    %943 = vmatpush1.bf16.msra.mxu0 0
    %944 = vmatprep.subr.bf16.mxu0 0
    %945 = vmatpush1.bf16.msra.mxu0 0
    %946 = vmatprep.subr.bf16.mxu0 0
    %947 = vmatpush1.bf16.msra.mxu0 0
    %948 = vmatprep.subr.bf16.mxu0 0
    %949 = vmatpush1.bf16.msra.mxu0 0
    %950 = vmatprep.subr.bf16.mxu0 0
    %951 = vmatpush1.bf16.msra.mxu0 0
    %952 = vmatprep.subr.bf16.mxu0 0
    %953 = vmatpush1.bf16.msra.mxu0 0
    %954 = vmatprep.subr.bf16.mxu0 0
    %955 = vmatpush1.bf16.msra.mxu0 0
    %956 = vmatprep.mubr.bf16.mxu0 0
    %957 = vmatmul.mubr.bf16.gmra.mrb[0].mxu0 %v919
    %v958 = vpop.f32.mrb[0].mxu0
    %v959 = vadd.f32 0.0, %v958
    %v960 = vpop.f32.mrb[0].mxu0
    %v961 = vpop.f32.mrb[0].mxu0
    %v962 = vpop.f32.mrb[0].mxu0
    %963 = vdwg.mxu0
    %964 = vrot.lane.b32.xlu0 %v178, 112
    %v965 = vpop.permute.xlu0 %964
    %v967 = vsel %vm189, %v673, 0
    %v970 = vsel %vm680, %v965, 0
    %972 = vmatprep.subr.bf16.mxu0 0
    %973 = vmatpush1.bf16.msra.mxu0 %v970
    %974 = vmatprep.subr.bf16.mxu0 0
    %975 = vmatpush1.bf16.msra.mxu0 0
    %976 = vmatprep.subr.bf16.mxu0 0
    %977 = vmatpush1.bf16.msra.mxu0 0
    %978 = vmatprep.subr.bf16.mxu0 0
    %979 = vmatpush1.bf16.msra.mxu0 0
    %980 = vmatprep.subr.bf16.mxu0 0
    %981 = vmatpush1.bf16.msra.mxu0 0
    %982 = vmatprep.subr.bf16.mxu0 0
    %983 = vmatpush1.bf16.msra.mxu0 0
    %984 = vmatprep.subr.bf16.mxu0 0
    %985 = vmatpush1.bf16.msra.mxu0 0
    %986 = vmatprep.subr.bf16.mxu0 0
    %987 = vmatpush1.bf16.msra.mxu0 0
    %988 = vmatprep.subr.bf16.mxu0 0
    %989 = vmatpush1.bf16.msra.mxu0 0
    %990 = vmatprep.subr.bf16.mxu0 0
    %991 = vmatpush1.bf16.msra.mxu0 0
    %992 = vmatprep.subr.bf16.mxu0 0
    %993 = vmatpush1.bf16.msra.mxu0 0
    %994 = vmatprep.subr.bf16.mxu0 0
    %995 = vmatpush1.bf16.msra.mxu0 0
    %996 = vmatprep.subr.bf16.mxu0 0
    %997 = vmatpush1.bf16.msra.mxu0 0
    %998 = vmatprep.subr.bf16.mxu0 0
    %999 = vmatpush1.bf16.msra.mxu0 0
    %1000 = vmatprep.subr.bf16.mxu0 0
    %1001 = vmatpush1.bf16.msra.mxu0 0
    %1002 = vmatprep.subr.bf16.mxu0 0
    %1003 = vmatpush1.bf16.msra.mxu0 0
    %1004 = vmatprep.mubr.bf16.mxu0 0
    %1005 = vmatmul.mubr.bf16.gmra.mrb[0].mxu0 %v967
    %v1006 = vpop.f32.mrb[0].mxu0
    %v1007 = vadd.f32 0.0, %v1006
    %v1008 = vpop.f32.mrb[0].mxu0
    %v1009 = vpop.f32.mrb[0].mxu0
    %v1010 = vpop.f32.mrb[0].mxu0
    %1011 = vdwg.mxu0
    %1012 = vrot.lane.b32.xlu0 %v179, 112
    %v1013 = vpop.permute.xlu0 %1012
    %v1015 = vsel %vm189, %v674, 0
    %v1018 = vsel %vm680, %v1013, 0
    %1020 = vmatprep.subr.bf16.mxu0 0
    %1021 = vmatpush1.bf16.msra.mxu0 %v1018
    %1022 = vmatprep.subr.bf16.mxu0 0
    %1023 = vmatpush1.bf16.msra.mxu0 0
    %1024 = vmatprep.subr.bf16.mxu0 0
    %1025 = vmatpush1.bf16.msra.mxu0 0
    %1026 = vmatprep.subr.bf16.mxu0 0
    %1027 = vmatpush1.bf16.msra.mxu0 0
    %1028 = vmatprep.subr.bf16.mxu0 0
    %1029 = vmatpush1.bf16.msra.mxu0 0
    %1030 = vmatprep.subr.bf16.mxu0 0
    %1031 = vmatpush1.bf16.msra.mxu0 0
    %1032 = vmatprep.subr.bf16.mxu0 0
    %1033 = vmatpush1.bf16.msra.mxu0 0
    %1034 = vmatprep.subr.bf16.mxu0 0
    %1035 = vmatpush1.bf16.msra.mxu0 0
    %1036 = vmatprep.subr.bf16.mxu0 0
    %1037 = vmatpush1.bf16.msra.mxu0 0
    %1038 = vmatprep.subr.bf16.mxu0 0
    %1039 = vmatpush1.bf16.msra.mxu0 0
    %1040 = vmatprep.subr.bf16.mxu0 0
    %1041 = vmatpush1.bf16.msra.mxu0 0
    %1042 = vmatprep.subr.bf16.mxu0 0
    %1043 = vmatpush1.bf16.msra.mxu0 0
    %1044 = vmatprep.subr.bf16.mxu0 0
    %1045 = vmatpush1.bf16.msra.mxu0 0
    %1046 = vmatprep.subr.bf16.mxu0 0
    %1047 = vmatpush1.bf16.msra.mxu0 0
    %1048 = vmatprep.subr.bf16.mxu0 0
    %1049 = vmatpush1.bf16.msra.mxu0 0
    %1050 = vmatprep.subr.bf16.mxu0 0
    %1051 = vmatpush1.bf16.msra.mxu0 0
    %1052 = vmatprep.mubr.bf16.mxu0 0
    %1053 = vmatmul.mubr.bf16.gmra.mrb[0].mxu0 %v1015
    %v1054 = vpop.f32.mrb[0].mxu0
    %v1055 = vadd.f32 0.0, %v1054
    %v1056 = vpop.f32.mrb[0].mxu0
    %v1057 = vpop.f32.mrb[0].mxu0
    %v1058 = vpop.f32.mrb[0].mxu0
    %1059 = vdwg.mxu0
    %1062 = vrot.lane.b32.xlu0 %v815, 8
    %v1063 = vpop.permute.xlu0 %1062
    %1064 = vrot.lane.b32.xlu0 %v863, 8
    %v1065 = vpop.permute.xlu0 %1064
    %1070 = vrot.lane.b32.xlu0 %v911, 16
    %v1071 = vpop.permute.xlu0 %1070
    %1072 = vrot.lane.b32.xlu0 %v959, 16
    %v1073 = vpop.permute.xlu0 %1072
    %1078 = vrot.lane.b32.xlu0 %v1007, 24
    %v1079 = vpop.permute.xlu0 %1078
    %1080 = vrot.lane.b32.xlu0 %v1055, 24
    %v1081 = vpop.permute.xlu0 %1080
    %v1084 = vsel %vm189, %v719, %v1063
    %v1085 = vsel %vm189, %v767, %v1065
    %vm1086 = vcmask 130048
    %v1087 = vsel %vm1086, %v1084, %v1071
    %v1088 = vsel %vm1086, %v1085, %v1073
    %vm1089 = vcmask 195584
    %v1090 = vsel %vm1089, %v1087, %v1079
    %v1091 = vsel %vm1089, %v1088, %v1081
    %v1092 = vpack.c.bf16 %v1091, %v1090
    %v1093 = vld [vmem:[%s6] sm:$0xf]
    %v1094 = vld [vmem:[%s6 + $0x4] sm:$0xf]
    %v1095 = vld [vmem:[%s6 + $0x8] sm:$0xf]
    %v1096 = vld [vmem:[%s6 + $0xc] sm:$0xf]
    %v1097 = vld [vmem:[%s7] sm:$0x1]
    %v1099 = vlaneseq
    %v1100 = vshrl.u32 %v1099, 7
    %v1101 = vsub.s32 0, %v1100
    %v1102 = vrot.slane %v1097, %v1101
    %v1108 = vunpack.c.l.b16 %v1093
    %v1109 = vunpack.c.l.b16 %v1094
    %v1110 = vunpack.c.l.b16 %v1095
    %v1111 = vunpack.c.l.b16 %v1096
    %v1112 = vpack.c.b16 %v1109, %v1108
    %v1113 = vpack.c.b16 %v1111, %v1110
    %v1117 = vsel %vm45, %v1092, 0
    %1119 = vmatprep.subr.bf16.mxu0 0
    %1120 = vmatpush1.bf16.msra.mxu0 %v1112
    %1121 = vmatprep.subr.bf16.mxu0 0
    %1122 = vmatpush1.bf16.msra.mxu0 %v1113
    %1123 = vmatprep.subr.bf16.mxu0 0
    %1124 = vmatpush1.bf16.msra.mxu0 0
    %1125 = vmatprep.subr.bf16.mxu0 0
    %1126 = vmatpush1.bf16.msra.mxu0 0
    %1127 = vmatprep.subr.bf16.mxu0 0
    %1128 = vmatpush1.bf16.msra.mxu0 0
    %1129 = vmatprep.subr.bf16.mxu0 0
    %1130 = vmatpush1.bf16.msra.mxu0 0
    %1131 = vmatprep.subr.bf16.mxu0 0
    %1132 = vmatpush1.bf16.msra.mxu0 0
    %1133 = vmatprep.subr.bf16.mxu0 0
    %1134 = vmatpush1.bf16.msra.mxu0 0
    %1135 = vmatprep.subr.bf16.mxu0 0
    %1136 = vmatpush1.bf16.msra.mxu0 0
    %1137 = vmatprep.subr.bf16.mxu0 0
    %1138 = vmatpush1.bf16.msra.mxu0 0
    %1139 = vmatprep.subr.bf16.mxu0 0
    %1140 = vmatpush1.bf16.msra.mxu0 0
    %1141 = vmatprep.subr.bf16.mxu0 0
    %1142 = vmatpush1.bf16.msra.mxu0 0
    %1143 = vmatprep.subr.bf16.mxu0 0
    %1144 = vmatpush1.bf16.msra.mxu0 0
    %1145 = vmatprep.subr.bf16.mxu0 0
    %1146 = vmatpush1.bf16.msra.mxu0 0
    %1147 = vmatprep.subr.bf16.mxu0 0
    %1148 = vmatpush1.bf16.msra.mxu0 0
    %1149 = vmatprep.subr.bf16.mxu0 0
    %1150 = vmatpush1.bf16.msra.mxu0 0
    %1151 = vmatprep.mubr.bf16.mxu0 0
    %1152 = vmatmul.mubr.bf16.gmra.mrb[0].mxu0 %v1117
    %v1153 = vpop.f32.mrb[0].mxu0
    %v1154 = vadd.f32 %v1102, %v1153
    %v1155 = vpop.f32.mrb[0].mxu0
    %v1156 = vpop.f32.mrb[0].mxu0
    %v1157 = vadd.f32 %v1102, %v1156
    %v1158 = vpop.f32.mrb[0].mxu0
    %1159 = vdwg.mxu0
    %v1160 = vadd.f32 %v43, %v1154
    %v1161 = vadd.f32 %v44, %v1157
    %v1162 = vsel %vm45, %v1160, 0.0
    %1163 = vadd.xlane.f32.xlu0 %v1162
    %v1164 = vpop.xlane.xlu0 %1163
    %v1165 = vsel %vm45, %v1161, 0.0
    %1166 = vadd.xlane.f32.xlu0 %v1165
    %v1167 = vpop.xlane.xlu0 %1166
    %v1168 = vmul.f32 %v1164, %v52
    %v1169 = vmul.f32 %v1167, %v52
    %v1170 = vsub.f32 %v1160, %v1168
    %v1171 = vsub.f32 %v1161, %v1169
    %v1172 = vmul.f32 %v1170, %v1170
    %v1173 = vmul.f32 %v1171, %v1171
    %v1174 = vsel %vm45, %v1172, 0.0
    %1175 = vadd.xlane.f32.xlu0 %v1174
    %v1176 = vpop.xlane.xlu0 %1175
    %v1177 = vsel %vm45, %v1173, 0.0
    %1178 = vadd.xlane.f32.xlu0 %v1177
    %v1179 = vpop.xlane.xlu0 %1178
    %v1180 = vmul.f32 %v1176, %v52
    %v1181 = vmul.f32 %v1179, %v52
    %v1182 = vadd.f32 %v1180, 1e-05
    %v1183 = vadd.f32 %v1181, 1e-05
    %v1184 = vrsqrt.pop %v1182
    %v1185 = vrsqrt.pop %v1183
    %v1186 = vmul.f32 %v1170, %v1184
    %v1187 = vmul.f32 %v1171, %v1185
    %v1188 = vld [vmem:[%s3] sm:$0x1]
    %v1190 = vlaneseq
    %v1191 = vshrl.u32 %v1190, 7
    %v1192 = vsub.s32 0, %v1191
    %v1193 = vrot.slane %v1188, %v1192
    %v1195 = vmul.f32 %v1186, %v1193
    %v1196 = vmul.f32 %v1187, %v1193
    %v1197 = vld [vmem:[%s4] sm:$0x1]
    %v1199 = vlaneseq
    %v1200 = vshrl.u32 %v1199, 7
    %v1201 = vsub.s32 0, %v1200
    %v1202 = vrot.slane %v1197, %v1201
    %v1204 = vadd.f32 %v1195, %v1202
    %v1205 = vadd.f32 %v1196, %v1202
    %v1206 = vpack.c.bf16 %v1205, %v1204
    %v1207 = vld [vmem:[%s8] sm:$0xf]
    %v1208 = vld [vmem:[%s8 + $0x4] sm:$0xf]
    %v1209 = vld [vmem:[%s8 + $0x8] sm:$0xf]
    %v1210 = vld [vmem:[%s8 + $0xc] sm:$0xf]
    %v1211 = vld [vmem:[%s9] sm:$0x1]
    %v1213 = vlaneseq
    %v1214 = vshrl.u32 %v1213, 7
    %v1215 = vsub.s32 0, %v1214
    %v1216 = vrot.slane %v1211, %v1215
    %v1222 = vunpack.c.l.b16 %v1207
    %v1223 = vunpack.c.l.b16 %v1208
    %v1224 = vunpack.c.l.b16 %v1209
    %v1225 = vunpack.c.l.b16 %v1210
    %v1226 = vpack.c.b16 %v1223, %v1222
    %v1227 = vpack.c.b16 %v1225, %v1224
    %v1231 = vsel %vm45, %v1206, 0
    %1233 = vmatprep.subr.bf16.mxu0 0
    %1234 = vmatpush1.bf16.msra.mxu0 %v1226
    %1235 = vmatprep.subr.bf16.mxu0 0
    %1236 = vmatpush1.bf16.msra.mxu0 %v1227
    %1237 = vmatprep.subr.bf16.mxu0 0
    %1238 = vmatpush1.bf16.msra.mxu0 0
    %1239 = vmatprep.subr.bf16.mxu0 0
    %1240 = vmatpush1.bf16.msra.mxu0 0
    %1241 = vmatprep.subr.bf16.mxu0 0
    %1242 = vmatpush1.bf16.msra.mxu0 0
    %1243 = vmatprep.subr.bf16.mxu0 0
    %1244 = vmatpush1.bf16.msra.mxu0 0
    %1245 = vmatprep.subr.bf16.mxu0 0
    %1246 = vmatpush1.bf16.msra.mxu0 0
    %1247 = vmatprep.subr.bf16.mxu0 0
    %1248 = vmatpush1.bf16.msra.mxu0 0
    %1249 = vmatprep.subr.bf16.mxu0 0
    %1250 = vmatpush1.bf16.msra.mxu0 0
    %1251 = vmatprep.subr.bf16.mxu0 0
    %1252 = vmatpush1.bf16.msra.mxu0 0
    %1253 = vmatprep.subr.bf16.mxu0 0
    %1254 = vmatpush1.bf16.msra.mxu0 0
    %1255 = vmatprep.subr.bf16.mxu0 0
    %1256 = vmatpush1.bf16.msra.mxu0 0
    %1257 = vmatprep.subr.bf16.mxu0 0
    %1258 = vmatpush1.bf16.msra.mxu0 0
    %1259 = vmatprep.subr.bf16.mxu0 0
    %1260 = vmatpush1.bf16.msra.mxu0 0
    %1261 = vmatprep.subr.bf16.mxu0 0
    %1262 = vmatpush1.bf16.msra.mxu0 0
    %1263 = vmatprep.subr.bf16.mxu0 0
    %1264 = vmatpush1.bf16.msra.mxu0 0
    %1265 = vmatprep.mubr.bf16.mxu0 0
    %1266 = vmatmul.mubr.bf16.gmra.mrb[0].mxu0 %v1231
    %v1267 = vpop.f32.mrb[0].mxu0
    %v1268 = vadd.f32 %v1216, %v1267
    %v1269 = vpop.f32.mrb[0].mxu0
    %v1270 = vpop.f32.mrb[0].mxu0
    %v1271 = vadd.f32 %v1216, %v1270
    %v1272 = vpop.f32.mrb[0].mxu0
    %1273 = vdwg.mxu0
    %v1274 = vmax.f32 %v1268, 0.0
    %v1275 = vmax.f32 %v1271, 0.0
    %v1276 = vpack.c.bf16 %v1275, %v1274
    %v1277 = vld [vmem:[%s10] sm:$0xf]
    %v1278 = vld [vmem:[%s10 + $0x4] sm:$0xf]
    %v1279 = vld [vmem:[%s10 + $0x8] sm:$0xf]
    %v1280 = vld [vmem:[%s10 + $0xc] sm:$0xf]
    %v1281 = vld [vmem:[%s10 + $0x10] sm:$0xf]
    %v1282 = vld [vmem:[%s10 + $0x14] sm:$0xf]
    %v1283 = vld [vmem:[%s10 + $0x18] sm:$0xf]
    %v1284 = vld [vmem:[%s10 + $0x1c] sm:$0xf]
    %v1285 = vld [vmem:[%s10 + $0x20] sm:$0xf]
    %v1286 = vld [vmem:[%s10 + $0x24] sm:$0xf]
    %v1287 = vld [vmem:[%s10 + $0x28] sm:$0xf]
    %v1288 = vld [vmem:[%s10 + $0x2c] sm:$0xf]
    %v1289 = vld [vmem:[%s10 + $0x30] sm:$0xf]
    %v1290 = vld [vmem:[%s10 + $0x34] sm:$0xf]
    %v1291 = vld [vmem:[%s10 + $0x38] sm:$0xf]
    %v1292 = vld [vmem:[%s10 + $0x3c] sm:$0xf]
    %v1293 = vld [vmem:[%s11] sm:$0x1]
    %v1295 = vlaneseq
    %v1296 = vshrl.u32 %v1295, 7
    %v1297 = vsub.s32 0, %v1296
    %v1298 = vrot.slane %v1293, %v1297
    %v1316 = vunpack.c.l.b16 %v1277
    %v1317 = vunpack.c.l.b16 %v1278
    %v1318 = vunpack.c.l.b16 %v1279
    %v1319 = vunpack.c.l.b16 %v1280
    %v1320 = vunpack.c.l.b16 %v1281
    %v1321 = vunpack.c.l.b16 %v1282
    %v1322 = vunpack.c.l.b16 %v1283
    %v1323 = vunpack.c.l.b16 %v1284
    %v1324 = vunpack.c.l.b16 %v1285
    %v1325 = vunpack.c.l.b16 %v1286
    %v1326 = vunpack.c.l.b16 %v1287
    %v1327 = vunpack.c.l.b16 %v1288
    %v1328 = vunpack.c.l.b16 %v1289
    %v1329 = vunpack.c.l.b16 %v1290
    %v1330 = vunpack.c.l.b16 %v1291
    %v1331 = vunpack.c.l.b16 %v1292
    %v1332 = vpack.c.b16 %v1317, %v1316
    %v1333 = vpack.c.b16 %v1319, %v1318
    %v1334 = vpack.c.b16 %v1321, %v1320
    %v1335 = vpack.c.b16 %v1323, %v1322
    %v1336 = vpack.c.b16 %v1325, %v1324
    %v1337 = vpack.c.b16 %v1327, %v1326
    %v1338 = vpack.c.b16 %v1329, %v1328
    %v1339 = vpack.c.b16 %v1331, %v1330
    %1348 = vmatprep.subr.bf16.mxu0 0
    %1349 = vmatpush1.bf16.msra.mxu0 %v1332
    %1350 = vmatprep.subr.bf16.mxu0 0
    %1351 = vmatpush1.bf16.msra.mxu0 %v1333
    %1352 = vmatprep.subr.bf16.mxu0 0
    %1353 = vmatpush1.bf16.msra.mxu0 %v1334
    %1354 = vmatprep.subr.bf16.mxu0 0
    %1355 = vmatpush1.bf16.msra.mxu0 %v1335
    %1356 = vmatprep.subr.bf16.mxu0 0
    %1357 = vmatpush1.bf16.msra.mxu0 %v1336
    %1358 = vmatprep.subr.bf16.mxu0 0
    %1359 = vmatpush1.bf16.msra.mxu0 %v1337
    %1360 = vmatprep.subr.bf16.mxu0 0
    %1361 = vmatpush1.bf16.msra.mxu0 %v1338
    %1362 = vmatprep.subr.bf16.mxu0 0
    %1363 = vmatpush1.bf16.msra.mxu0 %v1339
    %1364 = vmatprep.subr.bf16.mxu0 0
    %1365 = vmatpush1.bf16.msra.mxu0 0
    %1366 = vmatprep.subr.bf16.mxu0 0
    %1367 = vmatpush1.bf16.msra.mxu0 0
    %1368 = vmatprep.subr.bf16.mxu0 0
    %1369 = vmatpush1.bf16.msra.mxu0 0
    %1370 = vmatprep.subr.bf16.mxu0 0
    %1371 = vmatpush1.bf16.msra.mxu0 0
    %1372 = vmatprep.subr.bf16.mxu0 0
    %1373 = vmatpush1.bf16.msra.mxu0 0
    %1374 = vmatprep.subr.bf16.mxu0 0
    %1375 = vmatpush1.bf16.msra.mxu0 0
    %1376 = vmatprep.subr.bf16.mxu0 0
    %1377 = vmatpush1.bf16.msra.mxu0 0
    %1378 = vmatprep.subr.bf16.mxu0 0
    %1379 = vmatpush1.bf16.msra.mxu0 0
    %1380 = vmatprep.mubr.bf16.mxu0 0
    %1381 = vmatmul.mubr.bf16.gmra.mrb[0].mxu0 %v1276
    %v1382 = vpop.f32.mrb[0].mxu0
    %v1383 = vadd.f32 %v1298, %v1382
    %v1384 = vpop.f32.mrb[0].mxu0
    %v1385 = vpop.f32.mrb[0].mxu0
    %v1386 = vadd.f32 %v1298, %v1385
    %v1387 = vpop.f32.mrb[0].mxu0
    %1388 = vdwg.mxu0
    %v1389 = vadd.f32 %v1160, %v1383
    %v1390 = vadd.f32 %v1161, %v1386
    %1391 = vst.msk [vmem:[#allocation2] sm:$0xff] %vm45, %v1389
    %1392 = vst.msk [vmem:[#allocation2 + $0x8] sm:$0xff] %vm45, %v1390
    // Predicated region
    $region50: #{tpu_custom_call.1} parent=1 // pred_check
      _
    $region51: #{tpu_custom_call.1} parent=1 // pred_check_branch
      %1394 = sbr.rel (0) target = $region53
    $region52: #{tpu_custom_call.1} parent=1 // pred_region
      %s1396 = ssub.s32 256, 256
      %1397 = vsyncadd [#allocation3], %s1396
      %s1398 = sshll.u32 [#allocation2], 4
      %s1399 = int_to_ptr.vmem [resolvable:$true] %s1398
      %1404 = dma.vmem_to_hbm [thread:$0]  %s1399, 256, %s12, [#allocation3], 128, 128, 8
    $region53: #{tpu_custom_call.1} parent=1 // pred_fallthru
      _
    // Predicated region
    $region54: #{tpu_custom_call.1} parent=1 // pred_check
      _
    $region55: #{tpu_custom_call.1} parent=1 // pred_check_branch
      %1406 = sbr.rel (0) target = $region57
    $region56: #{tpu_custom_call.1} parent=1 // pred_region
      %1407 = dma.done [#allocation3], 256
    $region57: #{tpu_custom_call.1} parent=1 // pred_fallthru
      _
    %1408 = vsyncpa [#allocation3], 1

</llo_original>
